<compile_context>
chip_gen: v6e
topology: v6e:2x2x1
jax: 0.10.0
libtpu: 0.0.40
codegen_flags: <defaults>
</compile_context>

<pallas_src>
import functools

import jax
import jax.numpy as jnp
from jax.experimental import pallas as pl
from jax.experimental.pallas import tpu as pltpu


_INV_SQRT2 = 0.7071067811865476


# ----------------------------- math helpers --------------------------------
def _erf(x, *, approx_recip):
    # Abramowitz & Stegun 7.1.26 (max abs err ~1.5e-7). Uses exp (EUP) and, in the
    # perf path, an EUP reciprocal instead of an f32 divide.
    a1, a2, a3, a4, a5 = 0.254829592, -0.284496736, 1.421413741, -1.453152027, 1.061405429
    p = 0.3275911
    s = jnp.where(x >= 0.0, 1.0, -1.0)
    z = jnp.abs(x)
    denom = 1.0 + p * z
    t = pl.reciprocal(denom, approx=True) if approx_recip else 1.0 / denom
    poly = ((((a5 * t + a4) * t + a3) * t + a2) * t + a1) * t
    return s * (1.0 - poly * jnp.exp(-z * z))


def _gelu(x, *, approx_recip):
    # matches torch.nn.GELU() (exact, erf-based)
    return 0.5 * x * (1.0 + _erf(x * _INV_SQRT2, approx_recip=approx_recip))


# ------------------------------- kernel -------------------------------------
def ffn_kernel(x_ref, win_ref, bin_ref, wout_ref, bout_ref, o_ref, *, approx_recip):
    # [tm,H] @ [H,FF] -> f32 accum; GELU/bias in f32; [tm,FF] @ [FF,Dout] -> f32 accum.
    # No per-step weight casts: operands arrive in their MXU dtype from the wrapper.
    h = jnp.dot(x_ref[...], win_ref[...], preferred_element_type=jnp.float32)
    h = _gelu(h + bin_ref[...], approx_recip=approx_recip)
    h = h.astype(wout_ref.dtype)                     # no-op in the f32 path
    out = jnp.dot(h, wout_ref[...], preferred_element_type=jnp.float32) + bout_ref[...]
    o_ref[...] = out.astype(o_ref.dtype)


# ------------------------------- wrapper -------------------------------------
def _choose_row_tile(n_rows, block_rows, min_steps=4):
    if n_rows <= 8:
        return n_rows                                    # full-dim block, single step
    tm = max(8, (min(block_rows, n_rows) // 8) * 8)      # sublane-aligned row tile
    # v7x/megacore: ensure a few grid steps so both TensorCores shard + pipeline.
    if n_rows // tm < min_steps and n_rows >= min_steps * 8:
        tm_small = max(8, ((-(-n_rows // min_steps) + 7) // 8) * 8)
        tm = min(tm, tm_small)
    return tm


def position_wise_feed_forward(params, h_V, *, block_rows=512,
                               mxu_dtype=jnp.bfloat16, vmem_limit_bytes=None):
    """params = (W_in [H,FF], b_in [1,FF], W_out [FF,Dout], b_out [1,Dout]).

    mxu_dtype=None : full-f32 path (torch parity).
    mxu_dtype=bf16 : bf16 activations/weights/output in HBM, f32 accumulation (perf path).
    """
    w_in, b_in, w_out, b_out = params
    H = h_V.shape[-1]
    FF = w_in.shape[-1]
    Dout = w_out.shape[-1]

    # Fold batch/sequence into one row axis (wrapper-side layout plumbing only).
    x = h_V.reshape(-1, H)
    if mxu_dtype is not None:
        # Cast once, wrapper-side (no-op if the pipeline already runs bf16 activations).
        x = x.astype(mxu_dtype)
        w_in = w_in.astype(mxu_dtype)
        w_out = w_out.astype(mxu_dtype)
    b_in = b_in.astype(jnp.float32)       # biases stay f32: added to f32 accumulators
    b_out = b_out.astype(jnp.float32)
    out_dtype = x.dtype                   # bf16 output in the perf path, f32 otherwise

    N = x.shape[0]
    tm = _choose_row_tile(N, int(block_rows))
    grid = (pl.cdiv(N, tm),)              # partial last block masked by Pallas (no jnp.pad)

    act_bytes = jnp.dtype(out_dtype).itemsize
    w_bytes = jnp.dtype(w_in.dtype).itemsize
    cost = pl.CostEstimate(
        flops=2 * N * H * FF + 2 * N * FF * Dout,
        transcendentals=N * FF,
        bytes_accessed=(N * H + N * Dout) * act_bytes
        + (H * FF + FF * Dout) * w_bytes
        + (FF + Dout) * 4,
    )

    out = pl.pallas_call(
        functools.partial(ffn_kernel, approx_recip=(mxu_dtype is not None)),
        grid=grid,
        in_specs=[
            pl.BlockSpec((tm, H), lambda i: (i, 0)),      # activations: tiled over rows
            pl.BlockSpec((H, FF), lambda i: (0, 0)),      # W_in: VMEM-resident across steps
            pl.BlockSpec((1, FF), lambda i: (0, 0)),      # b_in
            pl.BlockSpec((FF, Dout), lambda i: (0, 0)),   # W_out
            pl.BlockSpec((1, Dout), lambda i: (0, 0)),    # b_out
        ],
        out_specs=pl.BlockSpec((tm, Dout), lambda i: (i, 0)),
        out_shape=jax.ShapeDtypeStruct((N, Dout), out_dtype),
        compiler_params=pltpu.CompilerParams(
            dimension_semantics=("parallel",),
            vmem_limit_bytes=vmem_limit_bytes,
        ),
        cost_estimate=cost,
    )(x, w_in, b_in, w_out, b_out)

    return out.reshape(h_V.shape[:-1] + (Dout,))


# --------------------------- pure-JAX reference ------------------------------
def ref_ffn(params, h_V):
    w_in, b_in, w_out, b_out = params
    h = jax.nn.gelu(h_V @ w_in + b_in, approximate=False)   # exact erf-GELU (torch default)
    return h @ w_out + b_out


# ------------------------------ param init ----------------------------------
def init_params(key, num_hidden, num_ff, num_out=None):
    if num_out is None:
        num_out = num_hidden
    k1, k2, k3, k4 = jax.random.split(key, 4)
    w_in = jax.random.normal(k1, (num_hidden, num_ff), jnp.float32) / jnp.sqrt(num_hidden)
    b_in = 0.01 * jax.random.normal(k2, (1, num_ff), jnp.float32)
    w_out = jax.random.normal(k3, (num_ff, num_out), jnp.float32) / jnp.sqrt(num_ff)
    b_out = 0.01 * jax.random.normal(k4, (1, num_out), jnp.float32)
    return (w_in, b_in, w_out, b_out)


# --------------------------------- main --------------------------------------
if __name__ == "__main__":
    # Lane-dense demo shapes (feature dims multiples of 128 -> no masked stores).
    B, L = 2, 256            # batch, nodes  -> N = 512 folded rows
    H, FF = 128, 512         # num_hidden, num_ff (num_out defaults to num_hidden)

    key = jax.random.PRNGKey(0)
    kx, kp = jax.random.split(key)
    h_V = jax.random.normal(kx, (B, L, H), jnp.float32)
    params = init_params(kp, H, FF)

    ref = ref_ffn(params, h_V)

    # f32 path (exact torch-parity check). Row-tile heuristic -> tm=128, 4 parallel steps.
    out_f32 = position_wise_feed_forward(params, h_V, mxu_dtype=None)
    jax.block_until_ready(out_f32)
    assert out_f32.shape == (B, L, H)
    assert out_f32.dtype == jnp.float32
    assert jnp.allclose(out_f32, ref, atol=2e-3, rtol=2e-3), "f32 FFN mismatch"

    # Default perf path: bf16 activations/weights/output in HBM, f32 accumulation.
    out_bf16 = position_wise_feed_forward(params, h_V)
    jax.block_until_ready(out_bf16)
    assert out_bf16.shape == (B, L, H)
    assert out_bf16.dtype == jnp.bfloat16
    assert jnp.allclose(out_bf16.astype(jnp.float32), ref, atol=5e-2, rtol=5e-2), \
        "bf16-I/O FFN mismatch"

    print("KERNEL_OK")
</pallas_src>

<mosaic_0001>
module attributes {stable_mosaic.version = 11 : i64} {
  func.func @ffn_kernel(%arg0: i32, %arg1: memref<128x128xf32, #tpu.memory_space<vmem>>, %arg2: memref<128x512xf32, #tpu.memory_space<vmem>>, %arg3: memref<1x512xf32, #tpu.memory_space<vmem>>, %arg4: memref<512x128xf32, #tpu.memory_space<vmem>>, %arg5: memref<1x128xf32, #tpu.memory_space<vmem>>, %arg6: memref<128x128xf32, #tpu.memory_space<vmem>>) attributes {dimension_semantics = [#tpu.dimension_semantics<parallel>], iteration_bounds = array<i64: 4>, scalar_prefetch = 0 : i64, scratch_operands = 0 : i64, tpu.core_type = #tpu.core_type<tc>, window_params = [{transform_indices = @transform_0, window_bounds = array<i64: 128, 128>}, {pipeline_mode = #tpu.pipeline_mode<synchronous>, transform_indices = @transform_1, window_bounds = array<i64: 128, 512>}, {pipeline_mode = #tpu.pipeline_mode<synchronous>, transform_indices = @transform_2, window_bounds = array<i64: 1, 512>}, {pipeline_mode = #tpu.pipeline_mode<synchronous>, transform_indices = @transform_3, window_bounds = array<i64: 512, 128>}, {pipeline_mode = #tpu.pipeline_mode<synchronous>, transform_indices = @transform_4, window_bounds = array<i64: 1, 128>}, {transform_indices = @transform_5, window_bounds = array<i64: 128, 128>}]} {
    %c0 = arith.constant 0 : index
    %c0_0 = arith.constant 0 : index
    %0 = vector.load %arg1[%c0, %c0_0] : memref<128x128xf32, #tpu.memory_space<vmem>>, vector<128x128xf32>
    %c0_1 = arith.constant 0 : index
    %c0_2 = arith.constant 0 : index
    %1 = vector.load %arg2[%c0_1, %c0_2] : memref<128x512xf32, #tpu.memory_space<vmem>>, vector<128x512xf32>
    %cst = arith.constant dense<0.000000e+00> : vector<128x512xf32>
    %2 = tpu.matmul %0, %1, %cst {dimension_numbers = #tpu.dot_dimension_numbers<[1], [0], [0], [1], [0, 0, 1, 1], [], []>} : vector<128x128xf32>, vector<128x512xf32>, vector<128x512xf32> -> vector<128x512xf32>
    %c0_3 = arith.constant 0 : index
    %c0_4 = arith.constant 0 : index
    %3 = vector.load %arg3[%c0_3, %c0_4] : memref<1x512xf32, #tpu.memory_space<vmem>>, vector<1x512xf32>
    %4 = vector.broadcast %3 : vector<1x512xf32> to vector<128x512xf32>
    %5 = arith.addf %2, %4 : vector<128x512xf32>
    %cst_5 = arith.constant 5.000000e-01 : f32
    %6 = vector.broadcast %cst_5 : f32 to vector<128x512xf32>
    %7 = arith.mulf %6, %5 : vector<128x512xf32>
    %cst_6 = arith.constant 0.707106769 : f32
    %8 = vector.broadcast %cst_6 : f32 to vector<128x512xf32>
    %9 = arith.mulf %5, %8 : vector<128x512xf32>
    %cst_7 = arith.constant 0.000000e+00 : f32
    %10 = vector.broadcast %cst_7 : f32 to vector<128x512xf32>
    %11 = arith.cmpf oge, %9, %10 : vector<128x512xf32>
    %cst_8 = arith.constant 1.000000e+00 : f32
    %cst_9 = arith.constant -1.000000e+00 : f32
    %12 = vector.broadcast %cst_8 : f32 to vector<128x512xf32>
    %13 = vector.broadcast %cst_9 : f32 to vector<128x512xf32>
    %14 = arith.select %11, %12, %13 : vector<128x512xi1>, vector<128x512xf32>
    %15 = math.absf %9 : vector<128x512xf32>
    %cst_10 = arith.constant 0.327591091 : f32
    %16 = vector.broadcast %cst_10 : f32 to vector<128x512xf32>
    %17 = arith.mulf %16, %15 : vector<128x512xf32>
    %cst_11 = arith.constant 1.000000e+00 : f32
    %18 = vector.broadcast %cst_11 : f32 to vector<128x512xf32>
    %19 = arith.addf %18, %17 : vector<128x512xf32>
    %cst_12 = arith.constant 1.000000e+00 : f32
    %20 = vector.broadcast %cst_12 : f32 to vector<128x512xf32>
    %21 = arith.divf %20, %19 : vector<128x512xf32>
    %cst_13 = arith.constant 1.06140542 : f32
    %22 = vector.broadcast %cst_13 : f32 to vector<128x512xf32>
    %23 = arith.mulf %22, %21 : vector<128x512xf32>
    %cst_14 = arith.constant -1.45315206 : f32
    %24 = vector.broadcast %cst_14 : f32 to vector<128x512xf32>
    %25 = arith.addf %23, %24 : vector<128x512xf32>
    %26 = arith.mulf %25, %21 : vector<128x512xf32>
    %cst_15 = arith.constant 1.42141378 : f32
    %27 = vector.broadcast %cst_15 : f32 to vector<128x512xf32>
    %28 = arith.addf %26, %27 : vector<128x512xf32>
    %29 = arith.mulf %28, %21 : vector<128x512xf32>
    %cst_16 = arith.constant -0.284496725 : f32
    %30 = vector.broadcast %cst_16 : f32 to vector<128x512xf32>
    %31 = arith.addf %29, %30 : vector<128x512xf32>
    %32 = arith.mulf %31, %21 : vector<128x512xf32>
    %cst_17 = arith.constant 0.254829586 : f32
    %33 = vector.broadcast %cst_17 : f32 to vector<128x512xf32>
    %34 = arith.addf %32, %33 : vector<128x512xf32>
    %35 = arith.mulf %34, %21 : vector<128x512xf32>
    %cst_18 = arith.constant 0.000000e+00 : f32
    %36 = vector.broadcast %cst_18 : f32 to vector<128x512xf32>
    %37 = arith.subf %36, %15 : vector<128x512xf32>
    %38 = arith.mulf %37, %15 : vector<128x512xf32>
    %39 = math.exp %38 : vector<128x512xf32>
    %40 = arith.mulf %35, %39 : vector<128x512xf32>
    %cst_19 = arith.constant 1.000000e+00 : f32
    %41 = vector.broadcast %cst_19 : f32 to vector<128x512xf32>
    %42 = arith.subf %41, %40 : vector<128x512xf32>
    %43 = arith.mulf %14, %42 : vector<128x512xf32>
    %cst_20 = arith.constant 1.000000e+00 : f32
    %44 = vector.broadcast %cst_20 : f32 to vector<128x512xf32>
    %45 = arith.addf %44, %43 : vector<128x512xf32>
    %46 = arith.mulf %7, %45 : vector<128x512xf32>
    %c0_21 = arith.constant 0 : index
    %c0_22 = arith.constant 0 : index
    %47 = vector.load %arg4[%c0_21, %c0_22] : memref<512x128xf32, #tpu.memory_space<vmem>>, vector<512x128xf32>
    %cst_23 = arith.constant dense<0.000000e+00> : vector<128x128xf32>
    %48 = tpu.matmul %46, %47, %cst_23 {dimension_numbers = #tpu.dot_dimension_numbers<[1], [0], [0], [1], [0, 0, 1, 1], [], []>} : vector<128x512xf32>, vector<512x128xf32>, vector<128x128xf32> -> vector<128x128xf32>
    %c0_24 = arith.constant 0 : index
    %c0_25 = arith.constant 0 : index
    %49 = vector.load %arg5[%c0_24, %c0_25] : memref<1x128xf32, #tpu.memory_space<vmem>>, vector<1x128xf32>
    %50 = vector.broadcast %49 : vector<1x128xf32> to vector<128x128xf32>
    %51 = arith.addf %48, %50 : vector<128x128xf32>
    %c0_26 = arith.constant 0 : index
    %c0_27 = arith.constant 0 : index
    %52 = vector.load %arg6[%c0_26, %c0_27] : memref<128x128xf32, #tpu.memory_space<vmem>>, vector<128x128xf32>
    tpu.vector_store %arg6[%c0_26, %c0_27], %51 {strides = array<i32>} : memref<128x128xf32, #tpu.memory_space<vmem>>, vector<128x128xf32>,
    return
  }
  func.func @transform_0(%arg0: i32) -> (i32, i32) {
    %c0_i32 = arith.constant 0 : i32
    %c0_i32_0 = arith.constant 0 : i32
    return %arg0, %c0_i32 : i32, i32
  }
  func.func @transform_1(%arg0: i32) -> (i32, i32) {
    %c0_i32 = arith.constant 0 : i32
    %c0_i32_0 = arith.constant 0 : i32
    %c0_i32_1 = arith.constant 0 : i32
    return %c0_i32, %c0_i32_0 : i32, i32
  }
  func.func @transform_2(%arg0: i32) -> (i32, i32) {
    %c0_i32 = arith.constant 0 : i32
    %c0_i32_0 = arith.constant 0 : i32
    %c0_i32_1 = arith.constant 0 : i32
    return %c0_i32, %c0_i32_0 : i32, i32
  }
  func.func @transform_3(%arg0: i32) -> (i32, i32) {
    %c0_i32 = arith.constant 0 : i32
    %c0_i32_0 = arith.constant 0 : i32
    %c0_i32_1 = arith.constant 0 : i32
    return %c0_i32, %c0_i32_0 : i32, i32
  }
  func.func @transform_4(%arg0: i32) -> (i32, i32) {
    %c0_i32 = arith.constant 0 : i32
    %c0_i32_0 = arith.constant 0 : i32
    %c0_i32_1 = arith.constant 0 : i32
    return %c0_i32, %c0_i32_0 : i32, i32
  }
  func.func @transform_5(%arg0: i32) -> (i32, i32) {
    %c0_i32 = arith.constant 0 : i32
    %c0_i32_0 = arith.constant 0 : i32
    return %arg0, %c0_i32 : i32, i32
  }
}

</mosaic_0001>

<llo_original>
// kernel: tpu_custom_call.1
$region0: #{tpu_custom_call.1}
  #allocation0 [shape = 'u32[]', space=smem, size = 0x4, offset = 0x4, fixed_abs, tag = 'smem constant byte address 0x4 - core index']
  #allocation1 [shape = 'u32[144,128]{1,0:T(1,128)}', space=vmem, size = 0x12000, scoped, tag = 'internal scratch']
  %s0 = inlined_call_operand.hbm [shape: f32[512,128], index: 0, kind: input, shape index: {}]
  %s1 = inlined_call_operand.hbm [shape: f32[128,512], index: 1, kind: input, shape index: {}]
  %s2 = inlined_call_operand.hbm [shape: f32[1,512], index: 2, kind: input, shape index: {}]
  %s3 = inlined_call_operand.hbm [shape: f32[512,128], index: 3, kind: input, shape index: {}]
  %s4 = inlined_call_operand.vmem [shape: f32[1,128], index: 4, kind: input, shape index: {}]
  %s5 = inlined_call_operand.hbm [shape: f32[512,128], index: 5, kind: output, shape index: {}]
  %s6 = sld [smem:[#allocation0]]
  $region69: #{tpu_custom_call.1} parent=0
    _
  %s8 = ssub.s32 1, %s6
  %s9 = scalar_select 0, %s8, %s6
  $region1: #{tpu_custom_call.1} parent=0
    #allocation2 [shape = 'u8[131072]{0}', space=vmem, size = 0x20000, scoped, tag = 'input window, operand 0']
    #allocation3 [shape = 's32[2]{0}', space=sflag, size = 0x8, scoped, tag = 'scoped memory for tpu_custom_call.1']
    #allocation4 [shape = 's32[2]{0}', space=sflag, size = 0x8, scoped, tag = 'scoped memory for tpu_custom_call.1']
    #allocation5 [shape = 'u8[262144]{0}', space=vmem, size = 0x40000, scoped, tag = 'input window, operand 1, single buffered']
    #allocation6 [shape = 's32[1]{0}', space=sflag, size = 0x4, scoped, tag = 'scoped memory for tpu_custom_call.1']
    #allocation7 [shape = 'u8[2048]{0}', space=vmem, size = 0x800, scoped, tag = 'input window, operand 2, single buffered']
    #allocation8 [shape = 'u8[262144]{0}', space=vmem, size = 0x40000, scoped, tag = 'input window, operand 3, single buffered']
    #allocation9 [shape = 's32[1]{0}', space=sflag, size = 0x4, scoped, tag = 'scoped memory for tpu_custom_call.1']
    #allocation10 [shape = 'u8[131072]{0}', space=vmem, size = 0x20000, scoped, tag = 'output window, operand 0']
    %10 = vsyncpa [#allocation3], 0
    %s11 = scalar_lea.sflag [#allocation3], 1
    %12 = vsyncpa %s11, 0
    %13 = vsyncpa [#allocation6], 0
    %14 = vsyncpa [#allocation9], 0
    %15 = vsyncpa [#allocation4], 0
    %s16 = scalar_lea.sflag [#allocation4], 1
    %17 = vsyncpa %s16, 0
    loop: start=0, step=1, limit=6
    $region2: #{tpu_custom_call.1} parent=1 // loop_pre_header
      _
    $region3: #{tpu_custom_call.1} parent=1 // loop_header
      %s19 = sphi 0, %s23
      %p20 = scmp.ge.s32.totalorder %s19, 6
      %s29 = sphi 0, %s31
      %s32 = sphi 0, %s29
      %s33 = sphi 0, %s32
      %s49 = sphi 0, %s33
      %s53 = sphi 0, %s53
      %s55 = sphi 0, %s53
      %s56 = sphi 0, %s55
      %s70 = sphi 0, %s56
      %s74 = sphi 0, %s74
      %s76 = sphi 0, %s74
      %s77 = sphi 0, %s76
      %s91 = sphi 0, %s77
      %s95 = sphi 0, %s95
      %s97 = sphi 0, %s95
      %s98 = sphi 0, %s97
      %s112 = sphi 0, %s98
      %s116 = sphi 0, %s116
      %s118 = sphi 0, %s116
      %s119 = sphi 0, %s118
      %s133 = sphi 0, %s119
      %s139 = sphi 0, %s141
      %s142 = sphi 0, %s139
      %s143 = sphi 0, %s142
      %s159 = sphi 0, %s143
    $region4: #{tpu_custom_call.1} parent=1 // loop_header_branch
      %22 = sbr.rel (%p20) target = $region8
    $region5: #{tpu_custom_call.1} parent=1 // loop_body
      %s24 = ssub.s32 %s19, 1
      %s25 = ssub.s32 %s19, 2
      %s26 = sadd.s32 %s19, 1
      %s27 = ssub.s32 %s19, %s26
      %p28 = scmp.eq.s32.totalorder %s27, 0
      %s30 = sadd.s32 %s29, 1
      %s31 = scalar_select %p28, %s29, %s30
      %p34 = pneg %p28
      %p35 = scmp.eq.s32.totalorder %s19, 3
      %p36 = por %p34, %p35
      %p37 = scmp.ne.s32.totalorder %s29, %s32
      %p38 = scmp.eq.s32.totalorder %s19, 0
      %p39 = por %p37, %p38
      %p40 = scmp.ne.s32.totalorder %s29, %s32
      %p41 = scmp.eq.s32.totalorder %s24, 3
      %p42 = por %p40, %p41
      %p43 = scmp.ne.s32.totalorder %s32, %s33
      %p44 = scmp.eq.s32.totalorder %s24, 0
      %p45 = por %p43, %p44
      %p46 = scmp.ne.s32.totalorder %s32, %s33
      %p47 = scmp.eq.s32.totalorder %s25, 3
      %p48 = por %p46, %p47
      %p50 = scmp.ne.s32.totalorder %s33, %s49
      %p51 = scmp.eq.s32.totalorder %s25, 0
      %p52 = por %p50, %p51
      %s54 = sadd.s32 %s53, 1
      %p57 = scmp.eq.s32.totalorder %s19, 3
      %p58 = scmp.ne.s32.totalorder %s53, %s55
      %p59 = scmp.eq.s32.totalorder %s19, 0
      %p60 = por %p58, %p59
      %p61 = scmp.ne.s32.totalorder %s53, %s55
      %p62 = scmp.eq.s32.totalorder %s24, 3
      %p63 = por %p61, %p62
      %p64 = scmp.ne.s32.totalorder %s55, %s56
      %p65 = scmp.eq.s32.totalorder %s24, 0
      %p66 = por %p64, %p65
      %p67 = scmp.ne.s32.totalorder %s55, %s56
      %p68 = scmp.eq.s32.totalorder %s25, 3
      %p69 = por %p67, %p68
      %p71 = scmp.ne.s32.totalorder %s56, %s70
      %p72 = scmp.eq.s32.totalorder %s25, 0
      %p73 = por %p71, %p72
      %s75 = sadd.s32 %s74, 1
      %p78 = scmp.eq.s32.totalorder %s19, 3
      %p79 = scmp.ne.s32.totalorder %s74, %s76
      %p80 = scmp.eq.s32.totalorder %s19, 0
      %p81 = por %p79, %p80
      %p82 = scmp.ne.s32.totalorder %s74, %s76
      %p83 = scmp.eq.s32.totalorder %s24, 3
      %p84 = por %p82, %p83
      %p85 = scmp.ne.s32.totalorder %s76, %s77
      %p86 = scmp.eq.s32.totalorder %s24, 0
      %p87 = por %p85, %p86
      %p88 = scmp.ne.s32.totalorder %s76, %s77
      %p89 = scmp.eq.s32.totalorder %s25, 3
      %p90 = por %p88, %p89
      %p92 = scmp.ne.s32.totalorder %s77, %s91
      %p93 = scmp.eq.s32.totalorder %s25, 0
      %p94 = por %p92, %p93
      %s96 = sadd.s32 %s95, 1
      %p99 = scmp.eq.s32.totalorder %s19, 3
      %p100 = scmp.ne.s32.totalorder %s95, %s97
      %p101 = scmp.eq.s32.totalorder %s19, 0
      %p102 = por %p100, %p101
      %p103 = scmp.ne.s32.totalorder %s95, %s97
      %p104 = scmp.eq.s32.totalorder %s24, 3
      %p105 = por %p103, %p104
      %p106 = scmp.ne.s32.totalorder %s97, %s98
      %p107 = scmp.eq.s32.totalorder %s24, 0
      %p108 = por %p106, %p107
      %p109 = scmp.ne.s32.totalorder %s97, %s98
      %p110 = scmp.eq.s32.totalorder %s25, 3
      %p111 = por %p109, %p110
      %p113 = scmp.ne.s32.totalorder %s98, %s112
      %p114 = scmp.eq.s32.totalorder %s25, 0
      %p115 = por %p113, %p114
      %s117 = sadd.s32 %s116, 1
      %p120 = scmp.eq.s32.totalorder %s19, 3
      %p121 = scmp.ne.s32.totalorder %s116, %s118
      %p122 = scmp.eq.s32.totalorder %s19, 0
      %p123 = por %p121, %p122
      %p124 = scmp.ne.s32.totalorder %s116, %s118
      %p125 = scmp.eq.s32.totalorder %s24, 3
      %p126 = por %p124, %p125
      %p127 = scmp.ne.s32.totalorder %s118, %s119
      %p128 = scmp.eq.s32.totalorder %s24, 0
      %p129 = por %p127, %p128
      %p130 = scmp.ne.s32.totalorder %s118, %s119
      %p131 = scmp.eq.s32.totalorder %s25, 3
      %p132 = por %p130, %p131
      %p134 = scmp.ne.s32.totalorder %s119, %s133
      %p135 = scmp.eq.s32.totalorder %s25, 0
      %p136 = por %p134, %p135
      %s137 = ssub.s32 %s19, %s26
      %p138 = scmp.eq.s32.totalorder %s137, 0
      %s140 = sadd.s32 %s139, 1
      %s141 = scalar_select %p138, %s139, %s140
      %p144 = pneg %p138
      %p145 = scmp.eq.s32.totalorder %s19, 3
      %p146 = por %p144, %p145
      %p147 = scmp.ne.s32.totalorder %s139, %s142
      %p148 = scmp.eq.s32.totalorder %s19, 0
      %p149 = por %p147, %p148
      %p150 = scmp.ne.s32.totalorder %s139, %s142
      %p151 = scmp.eq.s32.totalorder %s24, 3
      %p152 = por %p150, %p151
      %p153 = scmp.ne.s32.totalorder %s142, %s143
      %p154 = scmp.eq.s32.totalorder %s24, 0
      %p155 = por %p153, %p154
      %p156 = scmp.ne.s32.totalorder %s142, %s143
      %p157 = scmp.eq.s32.totalorder %s25, 3
      %p158 = por %p156, %p157
      %p160 = scmp.ne.s32.totalorder %s143, %s159
      %p161 = scmp.eq.s32.totalorder %s25, 0
      %p162 = por %p160, %p161
      %p163 = scmp.le.s32.totalorder 1, %s19
      %p164 = scmp.lt.s32.totalorder %s19, 5
      %p165 = pnand %p163, %p164
      %p166 = pneg %p165
      // Predicated region
      $region9: #{tpu_custom_call.1} parent=5 // pred_check
        _
      $region10: #{tpu_custom_call.1} parent=5 // pred_check_branch
        %168 = sbr.rel (%p165) target = $region12
      $region11: #{tpu_custom_call.1} parent=5 // pred_region
        %s169 = ssub.s32 %s19, 1
        // Predicated region
        $region13: #{tpu_custom_call.1} parent=11 // pred_check
          %p170 = pneg %p66
        $region14: #{tpu_custom_call.1} parent=11 // pred_check_branch
          %172 = sbr.rel (%p170) target = $region16
        $region15: #{tpu_custom_call.1} parent=11 // pred_region
          %s174 = ssub.s32 8192, 8192
          %175 = vsyncadd [#allocation6], %s174
          %s176 = sshll.u32 [#allocation5], 4
          %s177 = int_to_ptr.vmem [resolvable:$true] %s176
          %182 = dma.hbm_to_vmem [thread:$0]  %s1, 8192, %s177, [#allocation6], 512, 512, 32
        $region16: #{tpu_custom_call.1} parent=11 // pred_fallthru
          _
        // Predicated region
        $region17: #{tpu_custom_call.1} parent=11 // pred_check
          %p183 = pneg %p87
        $region18: #{tpu_custom_call.1} parent=11 // pred_check_branch
          %185 = sbr.rel (%p183) target = $region20
        $region19: #{tpu_custom_call.1} parent=11 // pred_region
          %s187 = ssub.s32 64, 64
          %188 = vsyncadd [#allocation6], %s187
          %s190 = sshll.u32 [#allocation7], 4
          %s191 = int_to_ptr.vmem [resolvable:$true] %s190
          %193 = dma.hbm_to_vmem [thread:$0]  %s2, 64, %s191, [#allocation6]
        $region20: #{tpu_custom_call.1} parent=11 // pred_fallthru
          _
        // Predicated region
        $region21: #{tpu_custom_call.1} parent=11 // pred_check
          %p194 = pneg %p108
        $region22: #{tpu_custom_call.1} parent=11 // pred_check_branch
          %196 = sbr.rel (%p194) target = $region24
        $region23: #{tpu_custom_call.1} parent=11 // pred_region
          %s198 = ssub.s32 8192, 8192
          %199 = vsyncadd [#allocation9], %s198
          %s200 = sshll.u32 [#allocation8], 4
          %s201 = int_to_ptr.vmem [resolvable:$true] %s200
          %206 = dma.hbm_to_vmem [thread:$0]  %s3, 8192, %s201, [#allocation9], 128, 128, 8
        $region24: #{tpu_custom_call.1} parent=11 // pred_fallthru
          _
        // Predicated region
        $region25: #{tpu_custom_call.1} parent=11 // pred_check
          %p207 = pneg %p129
        $region26: #{tpu_custom_call.1} parent=11 // pred_check_branch
          %209 = sbr.rel (%p207) target = $region28
        $region27: #{tpu_custom_call.1} parent=11 // pred_region
          _
        $region28: #{tpu_custom_call.1} parent=11 // pred_fallthru
          _
      $region12: #{tpu_custom_call.1} parent=5 // pred_fallthru
        _
      %p210 = scmp.lt.s32.totalorder %s19, 4
      // Predicated region
      $region29: #{tpu_custom_call.1} parent=5 // pred_check
        %p211 = pneg %p210
      $region30: #{tpu_custom_call.1} parent=5 // pred_check_branch
        %213 = sbr.rel (%p211) target = $region32
      $region31: #{tpu_custom_call.1} parent=5 // pred_region
        // Predicated region
        $region33: #{tpu_custom_call.1} parent=31 // pred_check
          %p214 = pneg %p39
        $region34: #{tpu_custom_call.1} parent=31 // pred_check_branch
          %216 = sbr.rel (%p214) target = $region36
        $region35: #{tpu_custom_call.1} parent=31 // pred_region
          %s217 = sand.u32 %s29, 1
          %s218 = scalar_lea.sflag [#allocation3], %s217
          %s219 = sand.u32 %s29, 1
          %s220 = smul.addr %s219, 128
          %s221 = scalar_lea.vmem [#allocation2], %s220
          %s222 = smul.u32 16, %s19
          %s224 = ssub.s32 2048, 2048
          %225 = vsyncadd %s218, %s224
          %s226 = smul.addr %s222, 128
          %s227 = scalar_lea.hbm %s0, %s226
          %s228 = sshll.u32 %s221, 4
          %s229 = int_to_ptr.vmem [resolvable:$true] %s228
          %234 = dma.hbm_to_vmem [thread:$0]  %s227, 2048, %s229, %s218, 128, 128, 8
        $region36: #{tpu_custom_call.1} parent=31 // pred_fallthru
          _
      $region32: #{tpu_custom_call.1} parent=5 // pred_fallthru
        _
      %p235 = scmp.le.s32.totalorder 1, %s19
      %p236 = scmp.lt.s32.totalorder %s19, 5
      %p237 = pnand %p235, %p236
      %p238 = pneg %p237
      // Predicated region
      $region37: #{tpu_custom_call.1} parent=5 // pred_check
        _
      $region38: #{tpu_custom_call.1} parent=5 // pred_check_branch
        %240 = sbr.rel (%p237) target = $region40
      $region39: #{tpu_custom_call.1} parent=5 // pred_region
        %s241 = ssub.s32 %s19, 1
        %s242 = sand.u32 %s32, 1
        %s243 = scalar_lea.sflag [#allocation3], %s242
        %s244 = sand.u32 %s32, 1
        %s245 = smul.addr %s244, 128
        %s246 = scalar_lea.vmem [#allocation2], %s245
        // Predicated region
        $region41: #{tpu_custom_call.1} parent=39 // pred_check
          %p247 = pneg %p45
        $region42: #{tpu_custom_call.1} parent=39 // pred_check_branch
          %249 = sbr.rel (%p247) target = $region44
        $region43: #{tpu_custom_call.1} parent=39 // pred_region
          %250 = dma.done %s243, 2048
        $region44: #{tpu_custom_call.1} parent=39 // pred_fallthru
          _
        // Predicated region
        $region45: #{tpu_custom_call.1} parent=39 // pred_check
          %p251 = pneg %p66
        $region46: #{tpu_custom_call.1} parent=39 // pred_check_branch
          %253 = sbr.rel (%p251) target = $region48
        $region47: #{tpu_custom_call.1} parent=39 // pred_region
          %254 = dma.done [#allocation6], 8192
        $region48: #{tpu_custom_call.1} parent=39 // pred_fallthru
          _
        // Predicated region
        $region49: #{tpu_custom_call.1} parent=39 // pred_check
          %p255 = pneg %p87
        $region50: #{tpu_custom_call.1} parent=39 // pred_check_branch
          %257 = sbr.rel (%p255) target = $region52
        $region51: #{tpu_custom_call.1} parent=39 // pred_region
          %258 = dma.done [#allocation6], 64
        $region52: #{tpu_custom_call.1} parent=39 // pred_fallthru
          _
        // Predicated region
        $region53: #{tpu_custom_call.1} parent=39 // pred_check
          %p259 = pneg %p108
        $region54: #{tpu_custom_call.1} parent=39 // pred_check_branch
          %261 = sbr.rel (%p259) target = $region56
        $region55: #{tpu_custom_call.1} parent=39 // pred_region
          %262 = dma.done [#allocation9], 8192
        $region56: #{tpu_custom_call.1} parent=39 // pred_fallthru
          _
        %s263 = sand.u32 %s32, 1
        %s264 = scalar_lea.sflag [#allocation3], %s263
        %s265 = sand.u32 %s32, 1
        %s266 = smul.addr %s265, 128
        %s267 = scalar_lea.vmem [#allocation2], %s266
        %p268 = pneg %p45
        %p269 = pneg %p42
        %p270 = pneg %p66
        %p271 = pneg %p63
        %p272 = pneg %p87
        %p273 = pneg %p84
        %p274 = pneg %p108
        %p275 = pneg %p105
        %p276 = pneg %p129
        %p277 = pneg %p126
        %p278 = pneg %p155
        %p279 = pneg %p152
        %s280 = sand.u32 %s142, 1
        %s281 = scalar_lea.sflag [#allocation4], %s280
        %s282 = sand.u32 %s142, 1
        %s283 = smul.addr %s282, 128
        %s284 = scalar_lea.vmem [#allocation10], %s283
        %s285 = smul.u32 16, %s24
        %s286 = smul.u32 16, %s24
        %v287 = vld [vmem:[%s246] sm:$0xff]
        %v288 = vld [vmem:[%s246 + $0x8] sm:$0xff]
        %v289 = vld [vmem:[%s246 + $0x10] sm:$0xff]
        %v290 = vld [vmem:[%s246 + $0x18] sm:$0xff]
        %v291 = vld [vmem:[%s246 + $0x20] sm:$0xff]
        %v292 = vld [vmem:[%s246 + $0x28] sm:$0xff]
        %v293 = vld [vmem:[%s246 + $0x30] sm:$0xff]
        %v294 = vld [vmem:[%s246 + $0x38] sm:$0xff]
        %v295 = vld [vmem:[%s246 + $0x40] sm:$0xff]
        %v296 = vld [vmem:[%s246 + $0x48] sm:$0xff]
        %v297 = vld [vmem:[%s246 + $0x50] sm:$0xff]
        %v298 = vld [vmem:[%s246 + $0x58] sm:$0xff]
        %v299 = vld [vmem:[%s246 + $0x60] sm:$0xff]
        %v300 = vld [vmem:[%s246 + $0x68] sm:$0xff]
        %v301 = vld [vmem:[%s246 + $0x70] sm:$0xff]
        %v302 = vld [vmem:[%s246 + $0x78] sm:$0xff]
        %v303 = vld [vmem:[#allocation5] sm:$0xff]
        %v304 = vld [vmem:[#allocation5 + $0x8] sm:$0xff]
        %v305 = vld [vmem:[#allocation5 + $0x10] sm:$0xff]
        %v306 = vld [vmem:[#allocation5 + $0x18] sm:$0xff]
        %v307 = vld [vmem:[#allocation5 + $0x20] sm:$0xff]
        %v308 = vld [vmem:[#allocation5 + $0x28] sm:$0xff]
        %v309 = vld [vmem:[#allocation5 + $0x30] sm:$0xff]
        %v310 = vld [vmem:[#allocation5 + $0x38] sm:$0xff]
        %v311 = vld [vmem:[#allocation5 + $0x40] sm:$0xff]
        %v312 = vld [vmem:[#allocation5 + $0x48] sm:$0xff]
        %v313 = vld [vmem:[#allocation5 + $0x50] sm:$0xff]
        %v314 = vld [vmem:[#allocation5 + $0x58] sm:$0xff]
        %v315 = vld [vmem:[#allocation5 + $0x60] sm:$0xff]
        %v316 = vld [vmem:[#allocation5 + $0x68] sm:$0xff]
        %v317 = vld [vmem:[#allocation5 + $0x70] sm:$0xff]
        %v318 = vld [vmem:[#allocation5 + $0x78] sm:$0xff]
        %v319 = vld [vmem:[#allocation5 + $0x80] sm:$0xff]
        %v320 = vld [vmem:[#allocation5 + $0x88] sm:$0xff]
        %v321 = vld [vmem:[#allocation5 + $0x90] sm:$0xff]
        %v322 = vld [vmem:[#allocation5 + $0x98] sm:$0xff]
        %v323 = vld [vmem:[#allocation5 + $0xa0] sm:$0xff]
        %v324 = vld [vmem:[#allocation5 + $0xa8] sm:$0xff]
        %v325 = vld [vmem:[#allocation5 + $0xb0] sm:$0xff]
        %v326 = vld [vmem:[#allocation5 + $0xb8] sm:$0xff]
        %v327 = vld [vmem:[#allocation5 + $0xc0] sm:$0xff]
        %v328 = vld [vmem:[#allocation5 + $0xc8] sm:$0xff]
        %v329 = vld [vmem:[#allocation5 + $0xd0] sm:$0xff]
        %v330 = vld [vmem:[#allocation5 + $0xd8] sm:$0xff]
        %v331 = vld [vmem:[#allocation5 + $0xe0] sm:$0xff]
        %v332 = vld [vmem:[#allocation5 + $0xe8] sm:$0xff]
        %v333 = vld [vmem:[#allocation5 + $0xf0] sm:$0xff]
        %v334 = vld [vmem:[#allocation5 + $0xf8] sm:$0xff]
        %v335 = vld [vmem:[#allocation5 + $0x100] sm:$0xff]
        %v336 = vld [vmem:[#allocation5 + $0x108] sm:$0xff]
        %v337 = vld [vmem:[#allocation5 + $0x110] sm:$0xff]
        %v338 = vld [vmem:[#allocation5 + $0x118] sm:$0xff]
        %v339 = vld [vmem:[#allocation5 + $0x120] sm:$0xff]
        %v340 = vld [vmem:[#allocation5 + $0x128] sm:$0xff]
        %v341 = vld [vmem:[#allocation5 + $0x130] sm:$0xff]
        %v342 = vld [vmem:[#allocation5 + $0x138] sm:$0xff]
        %v343 = vld [vmem:[#allocation5 + $0x140] sm:$0xff]
        %v344 = vld [vmem:[#allocation5 + $0x148] sm:$0xff]
        %v345 = vld [vmem:[#allocation5 + $0x150] sm:$0xff]
        %v346 = vld [vmem:[#allocation5 + $0x158] sm:$0xff]
        %v347 = vld [vmem:[#allocation5 + $0x160] sm:$0xff]
        %v348 = vld [vmem:[#allocation5 + $0x168] sm:$0xff]
        %v349 = vld [vmem:[#allocation5 + $0x170] sm:$0xff]
        %v350 = vld [vmem:[#allocation5 + $0x178] sm:$0xff]
        %v351 = vld [vmem:[#allocation5 + $0x180] sm:$0xff]
        %v352 = vld [vmem:[#allocation5 + $0x188] sm:$0xff]
        %v353 = vld [vmem:[#allocation5 + $0x190] sm:$0xff]
        %v354 = vld [vmem:[#allocation5 + $0x198] sm:$0xff]
        %v355 = vld [vmem:[#allocation5 + $0x1a0] sm:$0xff]
        %v356 = vld [vmem:[#allocation5 + $0x1a8] sm:$0xff]
        %v357 = vld [vmem:[#allocation5 + $0x1b0] sm:$0xff]
        %v358 = vld [vmem:[#allocation5 + $0x1b8] sm:$0xff]
        %v359 = vld [vmem:[#allocation5 + $0x1c0] sm:$0xff]
        %v360 = vld [vmem:[#allocation5 + $0x1c8] sm:$0xff]
        %v361 = vld [vmem:[#allocation5 + $0x1d0] sm:$0xff]
        %v362 = vld [vmem:[#allocation5 + $0x1d8] sm:$0xff]
        %v363 = vld [vmem:[#allocation5 + $0x1e0] sm:$0xff]
        %v364 = vld [vmem:[#allocation5 + $0x1e8] sm:$0xff]
        %v365 = vld [vmem:[#allocation5 + $0x1f0] sm:$0xff]
        %v366 = vld [vmem:[#allocation5 + $0x1f8] sm:$0xff]
        %v367 = vld [vmem:[#allocation7] sm:$0xf]
        %v369 = vlaneseq
        %v370 = vshrl.u32 %v369, 7
        %v371 = vsub.s32 0, %v370
        %v372 = vrot.slane %v367, %v371
        %v373 = vlaneseq
        %v374 = vshrl.u32 %v373, 7
        %v375 = vsub.s32 1, %v374
        %v376 = vrot.slane %v367, %v375
        %v377 = vlaneseq
        %v378 = vshrl.u32 %v377, 7
        %v379 = vsub.s32 2, %v378
        %v380 = vrot.slane %v367, %v379
        %v381 = vlaneseq
        %v382 = vshrl.u32 %v381, 7
        %v383 = vsub.s32 3, %v382
        %v384 = vrot.slane %v367, %v383
        %389 = vmatprep.subr.mxu0 %v364
        %390 = vmatpush1.msra.mxu0 %v363
        %391 = vmatprep.subr.mxu0 %v360
        %392 = vmatpush1.msra.mxu0 %v359
        %393 = vmatprep.subr.mxu0 %v356
        %394 = vmatpush1.msra.mxu0 %v355
        %395 = vmatprep.subr.mxu0 %v352
        %396 = vmatpush1.msra.mxu0 %v351
        %397 = vmatprep.subr.mxu0 %v348
        %398 = vmatpush1.msra.mxu0 %v347
        %399 = vmatprep.subr.mxu0 %v344
        %400 = vmatpush1.msra.mxu0 %v343
        %401 = vmatprep.subr.mxu0 %v340
        %402 = vmatpush1.msra.mxu0 %v339
        %403 = vmatprep.subr.mxu0 %v336
        %404 = vmatpush1.msra.mxu0 %v335
        %405 = vmatprep.subr.mxu0 %v332
        %406 = vmatpush1.msra.mxu0 %v331
        %407 = vmatprep.subr.mxu0 %v328
        %408 = vmatpush1.msra.mxu0 %v327
        %409 = vmatprep.subr.mxu0 %v324
        %410 = vmatpush1.msra.mxu0 %v323
        %411 = vmatprep.subr.mxu0 %v320
        %412 = vmatpush1.msra.mxu0 %v319
        %413 = vmatprep.subr.mxu0 %v316
        %414 = vmatpush1.msra.mxu0 %v315
        %415 = vmatprep.subr.mxu0 %v312
        %416 = vmatpush1.msra.mxu0 %v311
        %417 = vmatprep.subr.mxu0 %v308
        %418 = vmatpush1.msra.mxu0 %v307
        %419 = vmatprep.subr.mxu0 %v304
        %420 = vmatpush1.msra.mxu0 %v303
        %421 = vmatprep.subr.mxu0 0.0
        %422 = vmatpush2.msra.mxu0 0.0
        %423 = vmatprep.subr.mxu0 0.0
        %424 = vmatpush2.msra.mxu0 0.0
        %425 = vmatprep.subr.mxu0 0.0
        %426 = vmatpush2.msra.mxu0 0.0
        %427 = vmatprep.subr.mxu0 0.0
        %428 = vmatpush2.msra.mxu0 0.0
        %429 = vmatprep.subr.mxu0 0.0
        %430 = vmatpush2.msra.mxu0 0.0
        %431 = vmatprep.subr.mxu0 0.0
        %432 = vmatpush2.msra.mxu0 0.0
        %433 = vmatprep.subr.mxu0 0.0
        %434 = vmatpush2.msra.mxu0 0.0
        %435 = vmatprep.subr.mxu0 0.0
        %436 = vmatpush2.msra.mxu0 0.0
        %437 = vmatprep.subr.mxu0 0.0
        %438 = vmatpush2.msra.mxu0 0.0
        %439 = vmatprep.subr.mxu0 0.0
        %440 = vmatpush2.msra.mxu0 0.0
        %441 = vmatprep.subr.mxu0 0.0
        %442 = vmatpush2.msra.mxu0 0.0
        %443 = vmatprep.subr.mxu0 0.0
        %444 = vmatpush2.msra.mxu0 0.0
        %445 = vmatprep.subr.mxu0 0.0
        %446 = vmatpush2.msra.mxu0 0.0
        %447 = vmatprep.subr.mxu0 0.0
        %448 = vmatpush2.msra.mxu0 0.0
        %449 = vmatprep.subr.mxu0 0.0
        %450 = vmatpush2.msra.mxu0 0.0
        %451 = vmatprep.subr.mxu0 0.0
        %452 = vmatpush2.msra.mxu0 0.0
        %453 = vmatprep.mubr.f32.mxu0 0.0
        %454 = vmatmul.mubr.f32.gmra.mxu0 %v287
        %v455 = vpop.f32.mrf.mxu0
        %v456 = vadd.f32 %v372, %v455
        %v457 = vpop.f32.mrf.mxu0
        %v458 = vadd.f32 %v376, %v457
        %459 = vmatprep.mubr.f32.mxu0 0.0
        %460 = vmatmul.mubr.f32.gmra.mxu0 %v288
        %v461 = vpop.f32.mrf.mxu0
        %v462 = vadd.f32 %v372, %v461
        %v463 = vpop.f32.mrf.mxu0
        %v464 = vadd.f32 %v376, %v463
        %465 = vmatprep.mubr.f32.mxu0 0.0
        %466 = vmatmul.mubr.f32.gmra.mxu0 %v289
        %v467 = vpop.f32.mrf.mxu0
        %v468 = vadd.f32 %v372, %v467
        %v469 = vpop.f32.mrf.mxu0
        %v470 = vadd.f32 %v376, %v469
        %471 = vmatprep.mubr.f32.mxu0 0.0
        %472 = vmatmul.mubr.f32.gmra.mxu0 %v290
        %v473 = vpop.f32.mrf.mxu0
        %v474 = vadd.f32 %v372, %v473
        %v475 = vpop.f32.mrf.mxu0
        %v476 = vadd.f32 %v376, %v475
        %477 = vmatprep.mubr.f32.mxu0 0.0
        %478 = vmatmul.mubr.f32.gmra.mxu0 %v291
        %v479 = vpop.f32.mrf.mxu0
        %v480 = vadd.f32 %v372, %v479
        %v481 = vpop.f32.mrf.mxu0
        %v482 = vadd.f32 %v376, %v481
        %483 = vmatprep.mubr.f32.mxu0 0.0
        %484 = vmatmul.mubr.f32.gmra.mxu0 %v292
        %v485 = vpop.f32.mrf.mxu0
        %v486 = vadd.f32 %v372, %v485
        %v487 = vpop.f32.mrf.mxu0
        %v488 = vadd.f32 %v376, %v487
        %489 = vmatprep.mubr.f32.mxu0 0.0
        %490 = vmatmul.mubr.f32.gmra.mxu0 %v293
        %v491 = vpop.f32.mrf.mxu0
        %v492 = vadd.f32 %v372, %v491
        %v493 = vpop.f32.mrf.mxu0
        %v494 = vadd.f32 %v376, %v493
        %495 = vmatprep.mubr.f32.mxu0 0.0
        %496 = vmatmul.mubr.f32.gmra.mxu0 %v294
        %v497 = vpop.f32.mrf.mxu0
        %v498 = vadd.f32 %v372, %v497
        %v499 = vpop.f32.mrf.mxu0
        %v500 = vadd.f32 %v376, %v499
        %501 = vmatprep.mubr.f32.mxu0 0.0
        %502 = vmatmul.mubr.f32.gmra.mxu0 %v295
        %v503 = vpop.f32.mrf.mxu0
        %v504 = vadd.f32 %v372, %v503
        %v505 = vpop.f32.mrf.mxu0
        %v506 = vadd.f32 %v376, %v505
        %507 = vmatprep.mubr.f32.mxu0 0.0
        %508 = vmatmul.mubr.f32.gmra.mxu0 %v296
        %v509 = vpop.f32.mrf.mxu0
        %v510 = vadd.f32 %v372, %v509
        %v511 = vpop.f32.mrf.mxu0
        %v512 = vadd.f32 %v376, %v511
        %513 = vmatprep.mubr.f32.mxu0 0.0
        %514 = vmatmul.mubr.f32.gmra.mxu0 %v297
        %v515 = vpop.f32.mrf.mxu0
        %v516 = vadd.f32 %v372, %v515
        %v517 = vpop.f32.mrf.mxu0
        %v518 = vadd.f32 %v376, %v517
        %519 = vmatprep.mubr.f32.mxu0 0.0
        %520 = vmatmul.mubr.f32.gmra.mxu0 %v298
        %v521 = vpop.f32.mrf.mxu0
        %v522 = vadd.f32 %v372, %v521
        %v523 = vpop.f32.mrf.mxu0
        %v524 = vadd.f32 %v376, %v523
        %525 = vmatprep.mubr.f32.mxu0 0.0
        %526 = vmatmul.mubr.f32.gmra.mxu0 %v299
        %v527 = vpop.f32.mrf.mxu0
        %v528 = vadd.f32 %v372, %v527
        %v529 = vpop.f32.mrf.mxu0
        %v530 = vadd.f32 %v376, %v529
        %531 = vmatprep.mubr.f32.mxu0 0.0
        %532 = vmatmul.mubr.f32.gmra.mxu0 %v300
        %v533 = vpop.f32.mrf.mxu0
        %v534 = vadd.f32 %v372, %v533
        %v535 = vpop.f32.mrf.mxu0
        %v536 = vadd.f32 %v376, %v535
        %537 = vmatprep.mubr.f32.mxu0 0.0
        %538 = vmatmul.mubr.f32.gmra.mxu0 %v301
        %v539 = vpop.f32.mrf.mxu0
        %v540 = vadd.f32 %v372, %v539
        %v541 = vpop.f32.mrf.mxu0
        %v542 = vadd.f32 %v376, %v541
        %543 = vmatprep.mubr.f32.mxu0 0.0
        %544 = vmatmul.mubr.f32.gmra.mxu0 %v302
        %v545 = vpop.f32.mrf.mxu0
        %v546 = vadd.f32 %v372, %v545
        %v547 = vpop.f32.mrf.mxu0
        %v548 = vadd.f32 %v376, %v547
        %549 = vdwg.mxu0
        %550 = vmatprep.subr.mxu0 %v366
        %551 = vmatpush1.msra.mxu0 %v365
        %552 = vmatprep.subr.mxu0 %v362
        %553 = vmatpush1.msra.mxu0 %v361
        %554 = vmatprep.subr.mxu0 %v358
        %555 = vmatpush1.msra.mxu0 %v357
        %556 = vmatprep.subr.mxu0 %v354
        %557 = vmatpush1.msra.mxu0 %v353
        %558 = vmatprep.subr.mxu0 %v350
        %559 = vmatpush1.msra.mxu0 %v349
        %560 = vmatprep.subr.mxu0 %v346
        %561 = vmatpush1.msra.mxu0 %v345
        %562 = vmatprep.subr.mxu0 %v342
        %563 = vmatpush1.msra.mxu0 %v341
        %564 = vmatprep.subr.mxu0 %v338
        %565 = vmatpush1.msra.mxu0 %v337
        %566 = vmatprep.subr.mxu0 %v334
        %567 = vmatpush1.msra.mxu0 %v333
        %568 = vmatprep.subr.mxu0 %v330
        %569 = vmatpush1.msra.mxu0 %v329
        %570 = vmatprep.subr.mxu0 %v326
        %571 = vmatpush1.msra.mxu0 %v325
        %572 = vmatprep.subr.mxu0 %v322
        %573 = vmatpush1.msra.mxu0 %v321
        %574 = vmatprep.subr.mxu0 %v318
        %575 = vmatpush1.msra.mxu0 %v317
        %576 = vmatprep.subr.mxu0 %v314
        %577 = vmatpush1.msra.mxu0 %v313
        %578 = vmatprep.subr.mxu0 %v310
        %579 = vmatpush1.msra.mxu0 %v309
        %580 = vmatprep.subr.mxu0 %v306
        %581 = vmatpush1.msra.mxu0 %v305
        %582 = vmatprep.subr.mxu0 0.0
        %583 = vmatpush2.msra.mxu0 0.0
        %584 = vmatprep.subr.mxu0 0.0
        %585 = vmatpush2.msra.mxu0 0.0
        %586 = vmatprep.subr.mxu0 0.0
        %587 = vmatpush2.msra.mxu0 0.0
        %588 = vmatprep.subr.mxu0 0.0
        %589 = vmatpush2.msra.mxu0 0.0
        %590 = vmatprep.subr.mxu0 0.0
        %591 = vmatpush2.msra.mxu0 0.0
        %592 = vmatprep.subr.mxu0 0.0
        %593 = vmatpush2.msra.mxu0 0.0
        %594 = vmatprep.subr.mxu0 0.0
        %595 = vmatpush2.msra.mxu0 0.0
        %596 = vmatprep.subr.mxu0 0.0
        %597 = vmatpush2.msra.mxu0 0.0
        %598 = vmatprep.subr.mxu0 0.0
        %599 = vmatpush2.msra.mxu0 0.0
        %600 = vmatprep.subr.mxu0 0.0
        %601 = vmatpush2.msra.mxu0 0.0
        %602 = vmatprep.subr.mxu0 0.0
        %603 = vmatpush2.msra.mxu0 0.0
        %604 = vmatprep.subr.mxu0 0.0
        %605 = vmatpush2.msra.mxu0 0.0
        %606 = vmatprep.subr.mxu0 0.0
        %607 = vmatpush2.msra.mxu0 0.0
        %608 = vmatprep.subr.mxu0 0.0
        %609 = vmatpush2.msra.mxu0 0.0
        %610 = vmatprep.subr.mxu0 0.0
        %611 = vmatpush2.msra.mxu0 0.0
        %612 = vmatprep.subr.mxu0 0.0
        %613 = vmatpush2.msra.mxu0 0.0
        %614 = vmatprep.mubr.f32.mxu0 0.0
        %615 = vmatmul.mubr.f32.gmra.mxu0 %v287
        %v616 = vpop.f32.mrf.mxu0
        %v617 = vadd.f32 %v380, %v616
        %v618 = vpop.f32.mrf.mxu0
        %v619 = vadd.f32 %v384, %v618
        %620 = vmatprep.mubr.f32.mxu0 0.0
        %621 = vmatmul.mubr.f32.gmra.mxu0 %v288
        %v622 = vpop.f32.mrf.mxu0
        %v623 = vadd.f32 %v380, %v622
        %v624 = vpop.f32.mrf.mxu0
        %v625 = vadd.f32 %v384, %v624
        %626 = vmatprep.mubr.f32.mxu0 0.0
        %627 = vmatmul.mubr.f32.gmra.mxu0 %v289
        %v628 = vpop.f32.mrf.mxu0
        %v629 = vadd.f32 %v380, %v628
        %v630 = vpop.f32.mrf.mxu0
        %v631 = vadd.f32 %v384, %v630
        %632 = vmatprep.mubr.f32.mxu0 0.0
        %633 = vmatmul.mubr.f32.gmra.mxu0 %v290
        %v634 = vpop.f32.mrf.mxu0
        %v635 = vadd.f32 %v380, %v634
        %v636 = vpop.f32.mrf.mxu0
        %v637 = vadd.f32 %v384, %v636
        %638 = vmatprep.mubr.f32.mxu0 0.0
        %639 = vmatmul.mubr.f32.gmra.mxu0 %v291
        %v640 = vpop.f32.mrf.mxu0
        %v641 = vadd.f32 %v380, %v640
        %v642 = vpop.f32.mrf.mxu0
        %v643 = vadd.f32 %v384, %v642
        %644 = vmatprep.mubr.f32.mxu0 0.0
        %645 = vmatmul.mubr.f32.gmra.mxu0 %v292
        %v646 = vpop.f32.mrf.mxu0
        %v647 = vadd.f32 %v380, %v646
        %v648 = vpop.f32.mrf.mxu0
        %v649 = vadd.f32 %v384, %v648
        %650 = vmatprep.mubr.f32.mxu0 0.0
        %651 = vmatmul.mubr.f32.gmra.mxu0 %v293
        %v652 = vpop.f32.mrf.mxu0
        %v653 = vadd.f32 %v380, %v652
        %v654 = vpop.f32.mrf.mxu0
        %v655 = vadd.f32 %v384, %v654
        %656 = vmatprep.mubr.f32.mxu0 0.0
        %657 = vmatmul.mubr.f32.gmra.mxu0 %v294
        %v658 = vpop.f32.mrf.mxu0
        %v659 = vadd.f32 %v380, %v658
        %v660 = vpop.f32.mrf.mxu0
        %v661 = vadd.f32 %v384, %v660
        %662 = vmatprep.mubr.f32.mxu0 0.0
        %663 = vmatmul.mubr.f32.gmra.mxu0 %v295
        %v664 = vpop.f32.mrf.mxu0
        %v665 = vadd.f32 %v380, %v664
        %v666 = vpop.f32.mrf.mxu0
        %v667 = vadd.f32 %v384, %v666
        %668 = vmatprep.mubr.f32.mxu0 0.0
        %669 = vmatmul.mubr.f32.gmra.mxu0 %v296
        %v670 = vpop.f32.mrf.mxu0
        %v671 = vadd.f32 %v380, %v670
        %v672 = vpop.f32.mrf.mxu0
        %v673 = vadd.f32 %v384, %v672
        %674 = vmatprep.mubr.f32.mxu0 0.0
        %675 = vmatmul.mubr.f32.gmra.mxu0 %v297
        %v676 = vpop.f32.mrf.mxu0
        %v677 = vadd.f32 %v380, %v676
        %v678 = vpop.f32.mrf.mxu0
        %v679 = vadd.f32 %v384, %v678
        %680 = vmatprep.mubr.f32.mxu0 0.0
        %681 = vmatmul.mubr.f32.gmra.mxu0 %v298
        %v682 = vpop.f32.mrf.mxu0
        %v683 = vadd.f32 %v380, %v682
        %v684 = vpop.f32.mrf.mxu0
        %v685 = vadd.f32 %v384, %v684
        %686 = vmatprep.mubr.f32.mxu0 0.0
        %687 = vmatmul.mubr.f32.gmra.mxu0 %v299
        %v688 = vpop.f32.mrf.mxu0
        %v689 = vadd.f32 %v380, %v688
        %v690 = vpop.f32.mrf.mxu0
        %v691 = vadd.f32 %v384, %v690
        %692 = vmatprep.mubr.f32.mxu0 0.0
        %693 = vmatmul.mubr.f32.gmra.mxu0 %v300
        %v694 = vpop.f32.mrf.mxu0
        %v695 = vadd.f32 %v380, %v694
        %v696 = vpop.f32.mrf.mxu0
        %v697 = vadd.f32 %v384, %v696
        %698 = vmatprep.mubr.f32.mxu0 0.0
        %699 = vmatmul.mubr.f32.gmra.mxu0 %v301
        %v700 = vpop.f32.mrf.mxu0
        %v701 = vadd.f32 %v380, %v700
        %v702 = vpop.f32.mrf.mxu0
        %v703 = vadd.f32 %v384, %v702
        %704 = vmatprep.mubr.f32.mxu0 0.0
        %705 = vmatmul.mubr.f32.gmra.mxu0 %v302
        %v706 = vpop.f32.mrf.mxu0
        %v707 = vadd.f32 %v380, %v706
        %v708 = vpop.f32.mrf.mxu0
        %v709 = vadd.f32 %v384, %v708
        %710 = vdwg.mxu0
        %v711 = vmul.f32 %v456, 0.5
        %v712 = vmul.f32 %v458, 0.5
        %v713 = vmul.f32 %v617, 0.5
        %v714 = vmul.f32 %v619, 0.5
        %v715 = vmul.f32 %v462, 0.5
        %v716 = vmul.f32 %v464, 0.5
        %v717 = vmul.f32 %v623, 0.5
        %v718 = vmul.f32 %v625, 0.5
        %v719 = vmul.f32 %v468, 0.5
        %v720 = vmul.f32 %v470, 0.5
        %v721 = vmul.f32 %v629, 0.5
        %v722 = vmul.f32 %v631, 0.5
        %v723 = vmul.f32 %v474, 0.5
        %v724 = vmul.f32 %v476, 0.5
        %v725 = vmul.f32 %v635, 0.5
        %v726 = vmul.f32 %v637, 0.5
        %v727 = vmul.f32 %v480, 0.5
        %v728 = vmul.f32 %v482, 0.5
        %v729 = vmul.f32 %v641, 0.5
        %v730 = vmul.f32 %v643, 0.5
        %v731 = vmul.f32 %v486, 0.5
        %v732 = vmul.f32 %v488, 0.5
        %v733 = vmul.f32 %v647, 0.5
        %v734 = vmul.f32 %v649, 0.5
        %v735 = vmul.f32 %v492, 0.5
        %v736 = vmul.f32 %v494, 0.5
        %v737 = vmul.f32 %v653, 0.5
        %v738 = vmul.f32 %v655, 0.5
        %v739 = vmul.f32 %v498, 0.5
        %v740 = vmul.f32 %v500, 0.5
        %v741 = vmul.f32 %v659, 0.5
        %v742 = vmul.f32 %v661, 0.5
        %v743 = vmul.f32 %v504, 0.5
        %v744 = vmul.f32 %v506, 0.5
        %v745 = vmul.f32 %v665, 0.5
        %v746 = vmul.f32 %v667, 0.5
        %v747 = vmul.f32 %v510, 0.5
        %v748 = vmul.f32 %v512, 0.5
        %v749 = vmul.f32 %v671, 0.5
        %v750 = vmul.f32 %v673, 0.5
        %v751 = vmul.f32 %v516, 0.5
        %v752 = vmul.f32 %v518, 0.5
        %v753 = vmul.f32 %v677, 0.5
        %v754 = vmul.f32 %v679, 0.5
        %v755 = vmul.f32 %v522, 0.5
        %v756 = vmul.f32 %v524, 0.5
        %v757 = vmul.f32 %v683, 0.5
        %v758 = vmul.f32 %v685, 0.5
        %v759 = vmul.f32 %v528, 0.5
        %v760 = vmul.f32 %v530, 0.5
        %v761 = vmul.f32 %v689, 0.5
        %v762 = vmul.f32 %v691, 0.5
        %v763 = vmul.f32 %v534, 0.5
        %v764 = vmul.f32 %v536, 0.5
        %v765 = vmul.f32 %v695, 0.5
        %v766 = vmul.f32 %v697, 0.5
        %v767 = vmul.f32 %v540, 0.5
        %v768 = vmul.f32 %v542, 0.5
        %v769 = vmul.f32 %v701, 0.5
        %v770 = vmul.f32 %v703, 0.5
        %v771 = vmul.f32 %v546, 0.5
        %v772 = vmul.f32 %v548, 0.5
        %v773 = vmul.f32 %v707, 0.5
        %v774 = vmul.f32 %v709, 0.5
        %v775 = vmul.f32 %v456, 0.70710677
        %v776 = vmul.f32 %v458, 0.70710677
        %v777 = vmul.f32 %v617, 0.70710677
        %v778 = vmul.f32 %v619, 0.70710677
        %v779 = vmul.f32 %v462, 0.70710677
        %v780 = vmul.f32 %v464, 0.70710677
        %v781 = vmul.f32 %v623, 0.70710677
        %v782 = vmul.f32 %v625, 0.70710677
        %v783 = vmul.f32 %v468, 0.70710677
        %v784 = vmul.f32 %v470, 0.70710677
        %v785 = vmul.f32 %v629, 0.70710677
        %v786 = vmul.f32 %v631, 0.70710677
        %v787 = vmul.f32 %v474, 0.70710677
        %v788 = vmul.f32 %v476, 0.70710677
        %v789 = vmul.f32 %v635, 0.70710677
        %v790 = vmul.f32 %v637, 0.70710677
        %v791 = vmul.f32 %v480, 0.70710677
        %v792 = vmul.f32 %v482, 0.70710677
        %v793 = vmul.f32 %v641, 0.70710677
        %v794 = vmul.f32 %v643, 0.70710677
        %v795 = vmul.f32 %v486, 0.70710677
        %v796 = vmul.f32 %v488, 0.70710677
        %v797 = vmul.f32 %v647, 0.70710677
        %v798 = vmul.f32 %v649, 0.70710677
        %v799 = vmul.f32 %v492, 0.70710677
        %v800 = vmul.f32 %v494, 0.70710677
        %v801 = vmul.f32 %v653, 0.70710677
        %v802 = vmul.f32 %v655, 0.70710677
        %v803 = vmul.f32 %v498, 0.70710677
        %v804 = vmul.f32 %v500, 0.70710677
        %v805 = vmul.f32 %v659, 0.70710677
        %v806 = vmul.f32 %v661, 0.70710677
        %v807 = vmul.f32 %v504, 0.70710677
        %v808 = vmul.f32 %v506, 0.70710677
        %v809 = vmul.f32 %v665, 0.70710677
        %v810 = vmul.f32 %v667, 0.70710677
        %v811 = vmul.f32 %v510, 0.70710677
        %v812 = vmul.f32 %v512, 0.70710677
        %v813 = vmul.f32 %v671, 0.70710677
        %v814 = vmul.f32 %v673, 0.70710677
        %v815 = vmul.f32 %v516, 0.70710677
        %v816 = vmul.f32 %v518, 0.70710677
        %v817 = vmul.f32 %v677, 0.70710677
        %v818 = vmul.f32 %v679, 0.70710677
        %v819 = vmul.f32 %v522, 0.70710677
        %v820 = vmul.f32 %v524, 0.70710677
        %v821 = vmul.f32 %v683, 0.70710677
        %v822 = vmul.f32 %v685, 0.70710677
        %v823 = vmul.f32 %v528, 0.70710677
        %v824 = vmul.f32 %v530, 0.70710677
        %v825 = vmul.f32 %v689, 0.70710677
        %v826 = vmul.f32 %v691, 0.70710677
        %v827 = vmul.f32 %v534, 0.70710677
        %v828 = vmul.f32 %v536, 0.70710677
        %v829 = vmul.f32 %v695, 0.70710677
        %v830 = vmul.f32 %v697, 0.70710677
        %v831 = vmul.f32 %v540, 0.70710677
        %v832 = vmul.f32 %v542, 0.70710677
        %v833 = vmul.f32 %v701, 0.70710677
        %v834 = vmul.f32 %v703, 0.70710677
        %v835 = vmul.f32 %v546, 0.70710677
        %v836 = vmul.f32 %v548, 0.70710677
        %v837 = vmul.f32 %v707, 0.70710677
        %v838 = vmul.f32 %v709, 0.70710677
        %vm839 = vcmp.ge.f32.partialorder %v775, 0.0
        %vm840 = vcmp.ge.f32.partialorder %v776, 0.0
        %vm841 = vcmp.ge.f32.partialorder %v777, 0.0
        %vm842 = vcmp.ge.f32.partialorder %v778, 0.0
        %vm843 = vcmp.ge.f32.partialorder %v779, 0.0
        %vm844 = vcmp.ge.f32.partialorder %v780, 0.0
        %vm845 = vcmp.ge.f32.partialorder %v781, 0.0
        %vm846 = vcmp.ge.f32.partialorder %v782, 0.0
        %vm847 = vcmp.ge.f32.partialorder %v783, 0.0
        %vm848 = vcmp.ge.f32.partialorder %v784, 0.0
        %vm849 = vcmp.ge.f32.partialorder %v785, 0.0
        %vm850 = vcmp.ge.f32.partialorder %v786, 0.0
        %vm851 = vcmp.ge.f32.partialorder %v787, 0.0
        %vm852 = vcmp.ge.f32.partialorder %v788, 0.0
        %vm853 = vcmp.ge.f32.partialorder %v789, 0.0
        %vm854 = vcmp.ge.f32.partialorder %v790, 0.0
        %vm855 = vcmp.ge.f32.partialorder %v791, 0.0
        %vm856 = vcmp.ge.f32.partialorder %v792, 0.0
        %vm857 = vcmp.ge.f32.partialorder %v793, 0.0
        %vm858 = vcmp.ge.f32.partialorder %v794, 0.0
        %vm859 = vcmp.ge.f32.partialorder %v795, 0.0
        %vm860 = vcmp.ge.f32.partialorder %v796, 0.0
        %vm861 = vcmp.ge.f32.partialorder %v797, 0.0
        %vm862 = vcmp.ge.f32.partialorder %v798, 0.0
        %vm863 = vcmp.ge.f32.partialorder %v799, 0.0
        %vm864 = vcmp.ge.f32.partialorder %v800, 0.0
        %vm865 = vcmp.ge.f32.partialorder %v801, 0.0
        %vm866 = vcmp.ge.f32.partialorder %v802, 0.0
        %vm867 = vcmp.ge.f32.partialorder %v803, 0.0
        %vm868 = vcmp.ge.f32.partialorder %v804, 0.0
        %vm869 = vcmp.ge.f32.partialorder %v805, 0.0
        %vm870 = vcmp.ge.f32.partialorder %v806, 0.0
        %vm871 = vcmp.ge.f32.partialorder %v807, 0.0
        %vm872 = vcmp.ge.f32.partialorder %v808, 0.0
        %vm873 = vcmp.ge.f32.partialorder %v809, 0.0
        %vm874 = vcmp.ge.f32.partialorder %v810, 0.0
        %vm875 = vcmp.ge.f32.partialorder %v811, 0.0
        %vm876 = vcmp.ge.f32.partialorder %v812, 0.0
        %vm877 = vcmp.ge.f32.partialorder %v813, 0.0
        %vm878 = vcmp.ge.f32.partialorder %v814, 0.0
        %vm879 = vcmp.ge.f32.partialorder %v815, 0.0
        %vm880 = vcmp.ge.f32.partialorder %v816, 0.0
        %vm881 = vcmp.ge.f32.partialorder %v817, 0.0
        %vm882 = vcmp.ge.f32.partialorder %v818, 0.0
        %vm883 = vcmp.ge.f32.partialorder %v819, 0.0
        %vm884 = vcmp.ge.f32.partialorder %v820, 0.0
        %vm885 = vcmp.ge.f32.partialorder %v821, 0.0
        %vm886 = vcmp.ge.f32.partialorder %v822, 0.0
        %vm887 = vcmp.ge.f32.partialorder %v823, 0.0
        %vm888 = vcmp.ge.f32.partialorder %v824, 0.0
        %vm889 = vcmp.ge.f32.partialorder %v825, 0.0
        %vm890 = vcmp.ge.f32.partialorder %v826, 0.0
        %vm891 = vcmp.ge.f32.partialorder %v827, 0.0
        %vm892 = vcmp.ge.f32.partialorder %v828, 0.0
        %vm893 = vcmp.ge.f32.partialorder %v829, 0.0
        %vm894 = vcmp.ge.f32.partialorder %v830, 0.0
        %vm895 = vcmp.ge.f32.partialorder %v831, 0.0
        %vm896 = vcmp.ge.f32.partialorder %v832, 0.0
        %vm897 = vcmp.ge.f32.partialorder %v833, 0.0
        %vm898 = vcmp.ge.f32.partialorder %v834, 0.0
        %vm899 = vcmp.ge.f32.partialorder %v835, 0.0
        %vm900 = vcmp.ge.f32.partialorder %v836, 0.0
        %vm901 = vcmp.ge.f32.partialorder %v837, 0.0
        %vm902 = vcmp.ge.f32.partialorder %v838, 0.0
        %v903 = vsel %vm839, 1.0, -1.0
        %v904 = vsel %vm840, 1.0, -1.0
        %v905 = vsel %vm841, 1.0, -1.0
        %v906 = vsel %vm842, 1.0, -1.0
        %v907 = vsel %vm843, 1.0, -1.0
        %v908 = vsel %vm844, 1.0, -1.0
        %v909 = vsel %vm845, 1.0, -1.0
        %v910 = vsel %vm846, 1.0, -1.0
        %v911 = vsel %vm847, 1.0, -1.0
        %v912 = vsel %vm848, 1.0, -1.0
        %v913 = vsel %vm849, 1.0, -1.0
        %v914 = vsel %vm850, 1.0, -1.0
        %v915 = vsel %vm851, 1.0, -1.0
        %v916 = vsel %vm852, 1.0, -1.0
        %v917 = vsel %vm853, 1.0, -1.0
        %v918 = vsel %vm854, 1.0, -1.0
        %v919 = vsel %vm855, 1.0, -1.0
        %v920 = vsel %vm856, 1.0, -1.0
        %v921 = vsel %vm857, 1.0, -1.0
        %v922 = vsel %vm858, 1.0, -1.0
        %v923 = vsel %vm859, 1.0, -1.0
        %v924 = vsel %vm860, 1.0, -1.0
        %v925 = vsel %vm861, 1.0, -1.0
        %v926 = vsel %vm862, 1.0, -1.0
        %v927 = vsel %vm863, 1.0, -1.0
        %v928 = vsel %vm864, 1.0, -1.0
        %v929 = vsel %vm865, 1.0, -1.0
        %v930 = vsel %vm866, 1.0, -1.0
        %v931 = vsel %vm867, 1.0, -1.0
        %v932 = vsel %vm868, 1.0, -1.0
        %v933 = vsel %vm869, 1.0, -1.0
        %v934 = vsel %vm870, 1.0, -1.0
        %v935 = vsel %vm871, 1.0, -1.0
        %v936 = vsel %vm872, 1.0, -1.0
        %v937 = vsel %vm873, 1.0, -1.0
        %v938 = vsel %vm874, 1.0, -1.0
        %v939 = vsel %vm875, 1.0, -1.0
        %v940 = vsel %vm876, 1.0, -1.0
        %v941 = vsel %vm877, 1.0, -1.0
        %v942 = vsel %vm878, 1.0, -1.0
        %v943 = vsel %vm879, 1.0, -1.0
        %v944 = vsel %vm880, 1.0, -1.0
        %v945 = vsel %vm881, 1.0, -1.0
        %v946 = vsel %vm882, 1.0, -1.0
        %v947 = vsel %vm883, 1.0, -1.0
        %v948 = vsel %vm884, 1.0, -1.0
        %v949 = vsel %vm885, 1.0, -1.0
        %v950 = vsel %vm886, 1.0, -1.0
        %v951 = vsel %vm887, 1.0, -1.0
        %v952 = vsel %vm888, 1.0, -1.0
        %v953 = vsel %vm889, 1.0, -1.0
        %v954 = vsel %vm890, 1.0, -1.0
        %v955 = vsel %vm891, 1.0, -1.0
        %v956 = vsel %vm892, 1.0, -1.0
        %v957 = vsel %vm893, 1.0, -1.0
        %v958 = vsel %vm894, 1.0, -1.0
        %v959 = vsel %vm895, 1.0, -1.0
        %v960 = vsel %vm896, 1.0, -1.0
        %v961 = vsel %vm897, 1.0, -1.0
        %v962 = vsel %vm898, 1.0, -1.0
        %v963 = vsel %vm899, 1.0, -1.0
        %v964 = vsel %vm900, 1.0, -1.0
        %v965 = vsel %vm901, 1.0, -1.0
        %v966 = vsel %vm902, 1.0, -1.0
        %v967 = vand.u32 2147483647, %v775
        %v968 = vand.u32 2147483647, %v776
        %v969 = vand.u32 2147483647, %v777
        %v970 = vand.u32 2147483647, %v778
        %v971 = vand.u32 2147483647, %v779
        %v972 = vand.u32 2147483647, %v780
        %v973 = vand.u32 2147483647, %v781
        %v974 = vand.u32 2147483647, %v782
        %v975 = vand.u32 2147483647, %v783
        %v976 = vand.u32 2147483647, %v784
        %v977 = vand.u32 2147483647, %v785
        %v978 = vand.u32 2147483647, %v786
        %v979 = vand.u32 2147483647, %v787
        %v980 = vand.u32 2147483647, %v788
        %v981 = vand.u32 2147483647, %v789
        %v982 = vand.u32 2147483647, %v790
        %v983 = vand.u32 2147483647, %v791
        %v984 = vand.u32 2147483647, %v792
        %v985 = vand.u32 2147483647, %v793
        %v986 = vand.u32 2147483647, %v794
        %v987 = vand.u32 2147483647, %v795
        %v988 = vand.u32 2147483647, %v796
        %v989 = vand.u32 2147483647, %v797
        %v990 = vand.u32 2147483647, %v798
        %v991 = vand.u32 2147483647, %v799
        %v992 = vand.u32 2147483647, %v800
        %v993 = vand.u32 2147483647, %v801
        %v994 = vand.u32 2147483647, %v802
        %v995 = vand.u32 2147483647, %v803
        %v996 = vand.u32 2147483647, %v804
        %v997 = vand.u32 2147483647, %v805
        %v998 = vand.u32 2147483647, %v806
        %v999 = vand.u32 2147483647, %v807
        %v1000 = vand.u32 2147483647, %v808
        %v1001 = vand.u32 2147483647, %v809
        %v1002 = vand.u32 2147483647, %v810
        %v1003 = vand.u32 2147483647, %v811
        %v1004 = vand.u32 2147483647, %v812
        %v1005 = vand.u32 2147483647, %v813
        %v1006 = vand.u32 2147483647, %v814
        %v1007 = vand.u32 2147483647, %v815
        %v1008 = vand.u32 2147483647, %v816
        %v1009 = vand.u32 2147483647, %v817
        %v1010 = vand.u32 2147483647, %v818
        %v1011 = vand.u32 2147483647, %v819
        %v1012 = vand.u32 2147483647, %v820
        %v1013 = vand.u32 2147483647, %v821
        %v1014 = vand.u32 2147483647, %v822
        %v1015 = vand.u32 2147483647, %v823
        %v1016 = vand.u32 2147483647, %v824
        %v1017 = vand.u32 2147483647, %v825
        %v1018 = vand.u32 2147483647, %v826
        %v1019 = vand.u32 2147483647, %v827
        %v1020 = vand.u32 2147483647, %v828
        %v1021 = vand.u32 2147483647, %v829
        %v1022 = vand.u32 2147483647, %v830
        %v1023 = vand.u32 2147483647, %v831
        %v1024 = vand.u32 2147483647, %v832
        %v1025 = vand.u32 2147483647, %v833
        %v1026 = vand.u32 2147483647, %v834
        %v1027 = vand.u32 2147483647, %v835
        %v1028 = vand.u32 2147483647, %v836
        %v1029 = vand.u32 2147483647, %v837
        %v1030 = vand.u32 2147483647, %v838
        %v1031 = vmul.f32 %v967, 0.3275911
        %v1032 = vmul.f32 %v968, 0.3275911
        %v1033 = vmul.f32 %v969, 0.3275911
        %v1034 = vmul.f32 %v970, 0.3275911
        %v1035 = vmul.f32 %v971, 0.3275911
        %v1036 = vmul.f32 %v972, 0.3275911
        %v1037 = vmul.f32 %v973, 0.3275911
        %v1038 = vmul.f32 %v974, 0.3275911
        %v1039 = vmul.f32 %v975, 0.3275911
        %v1040 = vmul.f32 %v976, 0.3275911
        %v1041 = vmul.f32 %v977, 0.3275911
        %v1042 = vmul.f32 %v978, 0.3275911
        %v1043 = vmul.f32 %v979, 0.3275911
        %v1044 = vmul.f32 %v980, 0.3275911
        %v1045 = vmul.f32 %v981, 0.3275911
        %v1046 = vmul.f32 %v982, 0.3275911
        %v1047 = vmul.f32 %v983, 0.3275911
        %v1048 = vmul.f32 %v984, 0.3275911
        %v1049 = vmul.f32 %v985, 0.3275911
        %v1050 = vmul.f32 %v986, 0.3275911
        %v1051 = vmul.f32 %v987, 0.3275911
        %v1052 = vmul.f32 %v988, 0.3275911
        %v1053 = vmul.f32 %v989, 0.3275911
        %v1054 = vmul.f32 %v990, 0.3275911
        %v1055 = vmul.f32 %v991, 0.3275911
        %v1056 = vmul.f32 %v992, 0.3275911
        %v1057 = vmul.f32 %v993, 0.3275911
        %v1058 = vmul.f32 %v994, 0.3275911
        %v1059 = vmul.f32 %v995, 0.3275911
        %v1060 = vmul.f32 %v996, 0.3275911
        %v1061 = vmul.f32 %v997, 0.3275911
        %v1062 = vmul.f32 %v998, 0.3275911
        %v1063 = vmul.f32 %v999, 0.3275911
        %v1064 = vmul.f32 %v1000, 0.3275911
        %v1065 = vmul.f32 %v1001, 0.3275911
        %v1066 = vmul.f32 %v1002, 0.3275911
        %v1067 = vmul.f32 %v1003, 0.3275911
        %v1068 = vmul.f32 %v1004, 0.3275911
        %v1069 = vmul.f32 %v1005, 0.3275911
        %v1070 = vmul.f32 %v1006, 0.3275911
        %v1071 = vmul.f32 %v1007, 0.3275911
        %v1072 = vmul.f32 %v1008, 0.3275911
        %v1073 = vmul.f32 %v1009, 0.3275911
        %v1074 = vmul.f32 %v1010, 0.3275911
        %v1075 = vmul.f32 %v1011, 0.3275911
        %v1076 = vmul.f32 %v1012, 0.3275911
        %v1077 = vmul.f32 %v1013, 0.3275911
        %v1078 = vmul.f32 %v1014, 0.3275911
        %v1079 = vmul.f32 %v1015, 0.3275911
        %v1080 = vmul.f32 %v1016, 0.3275911
        %v1081 = vmul.f32 %v1017, 0.3275911
        %v1082 = vmul.f32 %v1018, 0.3275911
        %v1083 = vmul.f32 %v1019, 0.3275911
        %v1084 = vmul.f32 %v1020, 0.3275911
        %v1085 = vmul.f32 %v1021, 0.3275911
        %v1086 = vmul.f32 %v1022, 0.3275911
        %v1087 = vmul.f32 %v1023, 0.3275911
        %v1088 = vmul.f32 %v1024, 0.3275911
        %v1089 = vmul.f32 %v1025, 0.3275911
        %v1090 = vmul.f32 %v1026, 0.3275911
        %v1091 = vmul.f32 %v1027, 0.3275911
        %v1092 = vmul.f32 %v1028, 0.3275911
        %v1093 = vmul.f32 %v1029, 0.3275911
        %v1094 = vmul.f32 %v1030, 0.3275911
        %v1095 = vadd.f32 %v1031, 1.0
        %v1096 = vadd.f32 %v1032, 1.0
        %v1097 = vadd.f32 %v1033, 1.0
        %v1098 = vadd.f32 %v1034, 1.0
        %v1099 = vadd.f32 %v1035, 1.0
        %v1100 = vadd.f32 %v1036, 1.0
        %v1101 = vadd.f32 %v1037, 1.0
        %v1102 = vadd.f32 %v1038, 1.0
        %v1103 = vadd.f32 %v1039, 1.0
        %v1104 = vadd.f32 %v1040, 1.0
        %v1105 = vadd.f32 %v1041, 1.0
        %v1106 = vadd.f32 %v1042, 1.0
        %v1107 = vadd.f32 %v1043, 1.0
        %v1108 = vadd.f32 %v1044, 1.0
        %v1109 = vadd.f32 %v1045, 1.0
        %v1110 = vadd.f32 %v1046, 1.0
        %v1111 = vadd.f32 %v1047, 1.0
        %v1112 = vadd.f32 %v1048, 1.0
        %v1113 = vadd.f32 %v1049, 1.0
        %v1114 = vadd.f32 %v1050, 1.0
        %v1115 = vadd.f32 %v1051, 1.0
        %v1116 = vadd.f32 %v1052, 1.0
        %v1117 = vadd.f32 %v1053, 1.0
        %v1118 = vadd.f32 %v1054, 1.0
        %v1119 = vadd.f32 %v1055, 1.0
        %v1120 = vadd.f32 %v1056, 1.0
        %v1121 = vadd.f32 %v1057, 1.0
        %v1122 = vadd.f32 %v1058, 1.0
        %v1123 = vadd.f32 %v1059, 1.0
        %v1124 = vadd.f32 %v1060, 1.0
        %v1125 = vadd.f32 %v1061, 1.0
        %v1126 = vadd.f32 %v1062, 1.0
        %v1127 = vadd.f32 %v1063, 1.0
        %v1128 = vadd.f32 %v1064, 1.0
        %v1129 = vadd.f32 %v1065, 1.0
        %v1130 = vadd.f32 %v1066, 1.0
        %v1131 = vadd.f32 %v1067, 1.0
        %v1132 = vadd.f32 %v1068, 1.0
        %v1133 = vadd.f32 %v1069, 1.0
        %v1134 = vadd.f32 %v1070, 1.0
        %v1135 = vadd.f32 %v1071, 1.0
        %v1136 = vadd.f32 %v1072, 1.0
        %v1137 = vadd.f32 %v1073, 1.0
        %v1138 = vadd.f32 %v1074, 1.0
        %v1139 = vadd.f32 %v1075, 1.0
        %v1140 = vadd.f32 %v1076, 1.0
        %v1141 = vadd.f32 %v1077, 1.0
        %v1142 = vadd.f32 %v1078, 1.0
        %v1143 = vadd.f32 %v1079, 1.0
        %v1144 = vadd.f32 %v1080, 1.0
        %v1145 = vadd.f32 %v1081, 1.0
        %v1146 = vadd.f32 %v1082, 1.0
        %v1147 = vadd.f32 %v1083, 1.0
        %v1148 = vadd.f32 %v1084, 1.0
        %v1149 = vadd.f32 %v1085, 1.0
        %v1150 = vadd.f32 %v1086, 1.0
        %v1151 = vadd.f32 %v1087, 1.0
        %v1152 = vadd.f32 %v1088, 1.0
        %v1153 = vadd.f32 %v1089, 1.0
        %v1154 = vadd.f32 %v1090, 1.0
        %v1155 = vadd.f32 %v1091, 1.0
        %v1156 = vadd.f32 %v1092, 1.0
        %v1157 = vadd.f32 %v1093, 1.0
        %v1158 = vadd.f32 %v1094, 1.0
        %v1159 = vrcp.pop %v1095
        %v1160 = vmul.f32 1.0, %v1159
        %v1161 = vrcp.pop %v1096
        %v1162 = vmul.f32 1.0, %v1161
        %v1163 = vrcp.pop %v1097
        %v1164 = vmul.f32 1.0, %v1163
        %v1165 = vrcp.pop %v1098
        %v1166 = vmul.f32 1.0, %v1165
        %v1167 = vrcp.pop %v1099
        %v1168 = vmul.f32 1.0, %v1167
        %v1169 = vrcp.pop %v1100
        %v1170 = vmul.f32 1.0, %v1169
        %v1171 = vrcp.pop %v1101
        %v1172 = vmul.f32 1.0, %v1171
        %v1173 = vrcp.pop %v1102
        %v1174 = vmul.f32 1.0, %v1173
        %v1175 = vrcp.pop %v1103
        %v1176 = vmul.f32 1.0, %v1175
        %v1177 = vrcp.pop %v1104
        %v1178 = vmul.f32 1.0, %v1177
        %v1179 = vrcp.pop %v1105
        %v1180 = vmul.f32 1.0, %v1179
        %v1181 = vrcp.pop %v1106
        %v1182 = vmul.f32 1.0, %v1181
        %v1183 = vrcp.pop %v1107
        %v1184 = vmul.f32 1.0, %v1183
        %v1185 = vrcp.pop %v1108
        %v1186 = vmul.f32 1.0, %v1185
        %v1187 = vrcp.pop %v1109
        %v1188 = vmul.f32 1.0, %v1187
        %v1189 = vrcp.pop %v1110
        %v1190 = vmul.f32 1.0, %v1189
        %v1191 = vrcp.pop %v1111
        %v1192 = vmul.f32 1.0, %v1191
        %v1193 = vrcp.pop %v1112
        %v1194 = vmul.f32 1.0, %v1193
        %v1195 = vrcp.pop %v1113
        %v1196 = vmul.f32 1.0, %v1195
        %v1197 = vrcp.pop %v1114
        %v1198 = vmul.f32 1.0, %v1197
        %v1199 = vrcp.pop %v1115
        %v1200 = vmul.f32 1.0, %v1199
        %v1201 = vrcp.pop %v1116
        %v1202 = vmul.f32 1.0, %v1201
        %v1203 = vrcp.pop %v1117
        %v1204 = vmul.f32 1.0, %v1203
        %v1205 = vrcp.pop %v1118
        %v1206 = vmul.f32 1.0, %v1205
        %v1207 = vrcp.pop %v1119
        %v1208 = vmul.f32 1.0, %v1207
        %v1209 = vrcp.pop %v1120
        %v1210 = vmul.f32 1.0, %v1209
        %v1211 = vrcp.pop %v1121
        %v1212 = vmul.f32 1.0, %v1211
        %v1213 = vrcp.pop %v1122
        %v1214 = vmul.f32 1.0, %v1213
        %v1215 = vrcp.pop %v1123
        %v1216 = vmul.f32 1.0, %v1215
        %v1217 = vrcp.pop %v1124
        %v1218 = vmul.f32 1.0, %v1217
        %v1219 = vrcp.pop %v1125
        %v1220 = vmul.f32 1.0, %v1219
        %v1221 = vrcp.pop %v1126
        %v1222 = vmul.f32 1.0, %v1221
        %v1223 = vrcp.pop %v1127
        %v1224 = vmul.f32 1.0, %v1223
        %v1225 = vrcp.pop %v1128
        %v1226 = vmul.f32 1.0, %v1225
        %v1227 = vrcp.pop %v1129
        %v1228 = vmul.f32 1.0, %v1227
        %v1229 = vrcp.pop %v1130
        %v1230 = vmul.f32 1.0, %v1229
        %v1231 = vrcp.pop %v1131
        %v1232 = vmul.f32 1.0, %v1231
        %v1233 = vrcp.pop %v1132
        %v1234 = vmul.f32 1.0, %v1233
        %v1235 = vrcp.pop %v1133
        %v1236 = vmul.f32 1.0, %v1235
        %v1237 = vrcp.pop %v1134
        %v1238 = vmul.f32 1.0, %v1237
        %v1239 = vrcp.pop %v1135
        %v1240 = vmul.f32 1.0, %v1239
        %v1241 = vrcp.pop %v1136
        %v1242 = vmul.f32 1.0, %v1241
        %v1243 = vrcp.pop %v1137
        %v1244 = vmul.f32 1.0, %v1243
        %v1245 = vrcp.pop %v1138
        %v1246 = vmul.f32 1.0, %v1245
        %v1247 = vrcp.pop %v1139
        %v1248 = vmul.f32 1.0, %v1247
        %v1249 = vrcp.pop %v1140
        %v1250 = vmul.f32 1.0, %v1249
        %v1251 = vrcp.pop %v1141
        %v1252 = vmul.f32 1.0, %v1251
        %v1253 = vrcp.pop %v1142
        %v1254 = vmul.f32 1.0, %v1253
        %v1255 = vrcp.pop %v1143
        %v1256 = vmul.f32 1.0, %v1255
        %v1257 = vrcp.pop %v1144
        %v1258 = vmul.f32 1.0, %v1257
        %v1259 = vrcp.pop %v1145
        %v1260 = vmul.f32 1.0, %v1259
        %v1261 = vrcp.pop %v1146
        %v1262 = vmul.f32 1.0, %v1261
        %v1263 = vrcp.pop %v1147
        %v1264 = vmul.f32 1.0, %v1263
        %v1265 = vrcp.pop %v1148
        %v1266 = vmul.f32 1.0, %v1265
        %v1267 = vrcp.pop %v1149
        %v1268 = vmul.f32 1.0, %v1267
        %v1269 = vrcp.pop %v1150
        %v1270 = vmul.f32 1.0, %v1269
        %v1271 = vrcp.pop %v1151
        %v1272 = vmul.f32 1.0, %v1271
        %v1273 = vrcp.pop %v1152
        %v1274 = vmul.f32 1.0, %v1273
        %v1275 = vrcp.pop %v1153
        %v1276 = vmul.f32 1.0, %v1275
        %v1277 = vrcp.pop %v1154
        %v1278 = vmul.f32 1.0, %v1277
        %v1279 = vrcp.pop %v1155
        %v1280 = vmul.f32 1.0, %v1279
        %v1281 = vrcp.pop %v1156
        %v1282 = vmul.f32 1.0, %v1281
        %v1283 = vrcp.pop %v1157
        %v1284 = vmul.f32 1.0, %v1283
        %v1285 = vrcp.pop %v1158
        %v1286 = vmul.f32 1.0, %v1285
        %v1287 = vmul.f32 %v1160, 1.0614054
        %v1288 = vmul.f32 %v1162, 1.0614054
        %v1289 = vmul.f32 %v1164, 1.0614054
        %v1290 = vmul.f32 %v1166, 1.0614054
        %v1291 = vmul.f32 %v1168, 1.0614054
        %v1292 = vmul.f32 %v1170, 1.0614054
        %v1293 = vmul.f32 %v1172, 1.0614054
        %v1294 = vmul.f32 %v1174, 1.0614054
        %v1295 = vmul.f32 %v1176, 1.0614054
        %v1296 = vmul.f32 %v1178, 1.0614054
        %v1297 = vmul.f32 %v1180, 1.0614054
        %v1298 = vmul.f32 %v1182, 1.0614054
        %v1299 = vmul.f32 %v1184, 1.0614054
        %v1300 = vmul.f32 %v1186, 1.0614054
        %v1301 = vmul.f32 %v1188, 1.0614054
        %v1302 = vmul.f32 %v1190, 1.0614054
        %v1303 = vmul.f32 %v1192, 1.0614054
        %v1304 = vmul.f32 %v1194, 1.0614054
        %v1305 = vmul.f32 %v1196, 1.0614054
        %v1306 = vmul.f32 %v1198, 1.0614054
        %v1307 = vmul.f32 %v1200, 1.0614054
        %v1308 = vmul.f32 %v1202, 1.0614054
        %v1309 = vmul.f32 %v1204, 1.0614054
        %v1310 = vmul.f32 %v1206, 1.0614054
        %v1311 = vmul.f32 %v1208, 1.0614054
        %v1312 = vmul.f32 %v1210, 1.0614054
        %v1313 = vmul.f32 %v1212, 1.0614054
        %v1314 = vmul.f32 %v1214, 1.0614054
        %v1315 = vmul.f32 %v1216, 1.0614054
        %v1316 = vmul.f32 %v1218, 1.0614054
        %v1317 = vmul.f32 %v1220, 1.0614054
        %v1318 = vmul.f32 %v1222, 1.0614054
        %v1319 = vmul.f32 %v1224, 1.0614054
        %v1320 = vmul.f32 %v1226, 1.0614054
        %v1321 = vmul.f32 %v1228, 1.0614054
        %v1322 = vmul.f32 %v1230, 1.0614054
        %v1323 = vmul.f32 %v1232, 1.0614054
        %v1324 = vmul.f32 %v1234, 1.0614054
        %v1325 = vmul.f32 %v1236, 1.0614054
        %v1326 = vmul.f32 %v1238, 1.0614054
        %v1327 = vmul.f32 %v1240, 1.0614054
        %v1328 = vmul.f32 %v1242, 1.0614054
        %v1329 = vmul.f32 %v1244, 1.0614054
        %v1330 = vmul.f32 %v1246, 1.0614054
        %v1331 = vmul.f32 %v1248, 1.0614054
        %v1332 = vmul.f32 %v1250, 1.0614054
        %v1333 = vmul.f32 %v1252, 1.0614054
        %v1334 = vmul.f32 %v1254, 1.0614054
        %v1335 = vmul.f32 %v1256, 1.0614054
        %v1336 = vmul.f32 %v1258, 1.0614054
        %v1337 = vmul.f32 %v1260, 1.0614054
        %v1338 = vmul.f32 %v1262, 1.0614054
        %v1339 = vmul.f32 %v1264, 1.0614054
        %v1340 = vmul.f32 %v1266, 1.0614054
        %v1341 = vmul.f32 %v1268, 1.0614054
        %v1342 = vmul.f32 %v1270, 1.0614054
        %v1343 = vmul.f32 %v1272, 1.0614054
        %v1344 = vmul.f32 %v1274, 1.0614054
        %v1345 = vmul.f32 %v1276, 1.0614054
        %v1346 = vmul.f32 %v1278, 1.0614054
        %v1347 = vmul.f32 %v1280, 1.0614054
        %v1348 = vmul.f32 %v1282, 1.0614054
        %v1349 = vmul.f32 %v1284, 1.0614054
        %v1350 = vmul.f32 %v1286, 1.0614054
        %v1351 = vadd.f32 %v1287, -1.4531521
        %v1352 = vadd.f32 %v1288, -1.4531521
        %v1353 = vadd.f32 %v1289, -1.4531521
        %v1354 = vadd.f32 %v1290, -1.4531521
        %v1355 = vadd.f32 %v1291, -1.4531521
        %v1356 = vadd.f32 %v1292, -1.4531521
        %v1357 = vadd.f32 %v1293, -1.4531521
        %v1358 = vadd.f32 %v1294, -1.4531521
        %v1359 = vadd.f32 %v1295, -1.4531521
        %v1360 = vadd.f32 %v1296, -1.4531521
        %v1361 = vadd.f32 %v1297, -1.4531521
        %v1362 = vadd.f32 %v1298, -1.4531521
        %v1363 = vadd.f32 %v1299, -1.4531521
        %v1364 = vadd.f32 %v1300, -1.4531521
        %v1365 = vadd.f32 %v1301, -1.4531521
        %v1366 = vadd.f32 %v1302, -1.4531521
        %v1367 = vadd.f32 %v1303, -1.4531521
        %v1368 = vadd.f32 %v1304, -1.4531521
        %v1369 = vadd.f32 %v1305, -1.4531521
        %v1370 = vadd.f32 %v1306, -1.4531521
        %v1371 = vadd.f32 %v1307, -1.4531521
        %v1372 = vadd.f32 %v1308, -1.4531521
        %v1373 = vadd.f32 %v1309, -1.4531521
        %v1374 = vadd.f32 %v1310, -1.4531521
        %v1375 = vadd.f32 %v1311, -1.4531521
        %v1376 = vadd.f32 %v1312, -1.4531521
        %v1377 = vadd.f32 %v1313, -1.4531521
        %v1378 = vadd.f32 %v1314, -1.4531521
        %v1379 = vadd.f32 %v1315, -1.4531521
        %v1380 = vadd.f32 %v1316, -1.4531521
        %v1381 = vadd.f32 %v1317, -1.4531521
        %v1382 = vadd.f32 %v1318, -1.4531521
        %v1383 = vadd.f32 %v1319, -1.4531521
        %v1384 = vadd.f32 %v1320, -1.4531521
        %v1385 = vadd.f32 %v1321, -1.4531521
        %v1386 = vadd.f32 %v1322, -1.4531521
        %v1387 = vadd.f32 %v1323, -1.4531521
        %v1388 = vadd.f32 %v1324, -1.4531521
        %v1389 = vadd.f32 %v1325, -1.4531521
        %v1390 = vadd.f32 %v1326, -1.4531521
        %v1391 = vadd.f32 %v1327, -1.4531521
        %v1392 = vadd.f32 %v1328, -1.4531521
        %v1393 = vadd.f32 %v1329, -1.4531521
        %v1394 = vadd.f32 %v1330, -1.4531521
        %v1395 = vadd.f32 %v1331, -1.4531521
        %v1396 = vadd.f32 %v1332, -1.4531521
        %v1397 = vadd.f32 %v1333, -1.4531521
        %v1398 = vadd.f32 %v1334, -1.4531521
        %v1399 = vadd.f32 %v1335, -1.4531521
        %v1400 = vadd.f32 %v1336, -1.4531521
        %v1401 = vadd.f32 %v1337, -1.4531521
        %v1402 = vadd.f32 %v1338, -1.4531521
        %v1403 = vadd.f32 %v1339, -1.4531521
        %v1404 = vadd.f32 %v1340, -1.4531521
        %v1405 = vadd.f32 %v1341, -1.4531521
        %v1406 = vadd.f32 %v1342, -1.4531521
        %v1407 = vadd.f32 %v1343, -1.4531521
        %v1408 = vadd.f32 %v1344, -1.4531521
        %v1409 = vadd.f32 %v1345, -1.4531521
        %v1410 = vadd.f32 %v1346, -1.4531521
        %v1411 = vadd.f32 %v1347, -1.4531521
        %v1412 = vadd.f32 %v1348, -1.4531521
        %v1413 = vadd.f32 %v1349, -1.4531521
        %v1414 = vadd.f32 %v1350, -1.4531521
        %v1415 = vmul.f32 %v1351, %v1160
        %v1416 = vmul.f32 %v1352, %v1162
        %v1417 = vmul.f32 %v1353, %v1164
        %v1418 = vmul.f32 %v1354, %v1166
        %v1419 = vmul.f32 %v1355, %v1168
        %v1420 = vmul.f32 %v1356, %v1170
        %v1421 = vmul.f32 %v1357, %v1172
        %v1422 = vmul.f32 %v1358, %v1174
        %v1423 = vmul.f32 %v1359, %v1176
        %v1424 = vmul.f32 %v1360, %v1178
        %v1425 = vmul.f32 %v1361, %v1180
        %v1426 = vmul.f32 %v1362, %v1182
        %v1427 = vmul.f32 %v1363, %v1184
        %v1428 = vmul.f32 %v1364, %v1186
        %v1429 = vmul.f32 %v1365, %v1188
        %v1430 = vmul.f32 %v1366, %v1190
        %v1431 = vmul.f32 %v1367, %v1192
        %v1432 = vmul.f32 %v1368, %v1194
        %v1433 = vmul.f32 %v1369, %v1196
        %v1434 = vmul.f32 %v1370, %v1198
        %v1435 = vmul.f32 %v1371, %v1200
        %v1436 = vmul.f32 %v1372, %v1202
        %v1437 = vmul.f32 %v1373, %v1204
        %v1438 = vmul.f32 %v1374, %v1206
        %v1439 = vmul.f32 %v1375, %v1208
        %v1440 = vmul.f32 %v1376, %v1210
        %v1441 = vmul.f32 %v1377, %v1212
        %v1442 = vmul.f32 %v1378, %v1214
        %v1443 = vmul.f32 %v1379, %v1216
        %v1444 = vmul.f32 %v1380, %v1218
        %v1445 = vmul.f32 %v1381, %v1220
        %v1446 = vmul.f32 %v1382, %v1222
        %v1447 = vmul.f32 %v1383, %v1224
        %v1448 = vmul.f32 %v1384, %v1226
        %v1449 = vmul.f32 %v1385, %v1228
        %v1450 = vmul.f32 %v1386, %v1230
        %v1451 = vmul.f32 %v1387, %v1232
        %v1452 = vmul.f32 %v1388, %v1234
        %v1453 = vmul.f32 %v1389, %v1236
        %v1454 = vmul.f32 %v1390, %v1238
        %v1455 = vmul.f32 %v1391, %v1240
        %v1456 = vmul.f32 %v1392, %v1242
        %v1457 = vmul.f32 %v1393, %v1244
        %v1458 = vmul.f32 %v1394, %v1246
        %v1459 = vmul.f32 %v1395, %v1248
        %v1460 = vmul.f32 %v1396, %v1250
        %v1461 = vmul.f32 %v1397, %v1252
        %v1462 = vmul.f32 %v1398, %v1254
        %v1463 = vmul.f32 %v1399, %v1256
        %v1464 = vmul.f32 %v1400, %v1258
        %v1465 = vmul.f32 %v1401, %v1260
        %v1466 = vmul.f32 %v1402, %v1262
        %v1467 = vmul.f32 %v1403, %v1264
        %v1468 = vmul.f32 %v1404, %v1266
        %v1469 = vmul.f32 %v1405, %v1268
        %v1470 = vmul.f32 %v1406, %v1270
        %v1471 = vmul.f32 %v1407, %v1272
        %v1472 = vmul.f32 %v1408, %v1274
        %v1473 = vmul.f32 %v1409, %v1276
        %v1474 = vmul.f32 %v1410, %v1278
        %v1475 = vmul.f32 %v1411, %v1280
        %v1476 = vmul.f32 %v1412, %v1282
        %v1477 = vmul.f32 %v1413, %v1284
        %v1478 = vmul.f32 %v1414, %v1286
        %v1479 = vadd.f32 %v1415, 1.4214138
        %v1480 = vadd.f32 %v1416, 1.4214138
        %v1481 = vadd.f32 %v1417, 1.4214138
        %v1482 = vadd.f32 %v1418, 1.4214138
        %v1483 = vadd.f32 %v1419, 1.4214138
        %v1484 = vadd.f32 %v1420, 1.4214138
        %v1485 = vadd.f32 %v1421, 1.4214138
        %v1486 = vadd.f32 %v1422, 1.4214138
        %v1487 = vadd.f32 %v1423, 1.4214138
        %v1488 = vadd.f32 %v1424, 1.4214138
        %v1489 = vadd.f32 %v1425, 1.4214138
        %v1490 = vadd.f32 %v1426, 1.4214138
        %v1491 = vadd.f32 %v1427, 1.4214138
        %v1492 = vadd.f32 %v1428, 1.4214138
        %v1493 = vadd.f32 %v1429, 1.4214138
        %v1494 = vadd.f32 %v1430, 1.4214138
        %v1495 = vadd.f32 %v1431, 1.4214138
        %v1496 = vadd.f32 %v1432, 1.4214138
        %v1497 = vadd.f32 %v1433, 1.4214138
        %v1498 = vadd.f32 %v1434, 1.4214138
        %v1499 = vadd.f32 %v1435, 1.4214138
        %v1500 = vadd.f32 %v1436, 1.4214138
        %v1501 = vadd.f32 %v1437, 1.4214138
        %v1502 = vadd.f32 %v1438, 1.4214138
        %v1503 = vadd.f32 %v1439, 1.4214138
        %v1504 = vadd.f32 %v1440, 1.4214138
        %v1505 = vadd.f32 %v1441, 1.4214138
        %v1506 = vadd.f32 %v1442, 1.4214138
        %v1507 = vadd.f32 %v1443, 1.4214138
        %v1508 = vadd.f32 %v1444, 1.4214138
        %v1509 = vadd.f32 %v1445, 1.4214138
        %v1510 = vadd.f32 %v1446, 1.4214138
        %v1511 = vadd.f32 %v1447, 1.4214138
        %v1512 = vadd.f32 %v1448, 1.4214138
        %v1513 = vadd.f32 %v1449, 1.4214138
        %v1514 = vadd.f32 %v1450, 1.4214138
        %v1515 = vadd.f32 %v1451, 1.4214138
        %v1516 = vadd.f32 %v1452, 1.4214138
        %v1517 = vadd.f32 %v1453, 1.4214138
        %v1518 = vadd.f32 %v1454, 1.4214138
        %v1519 = vadd.f32 %v1455, 1.4214138
        %v1520 = vadd.f32 %v1456, 1.4214138
        %v1521 = vadd.f32 %v1457, 1.4214138
        %v1522 = vadd.f32 %v1458, 1.4214138
        %v1523 = vadd.f32 %v1459, 1.4214138
        %v1524 = vadd.f32 %v1460, 1.4214138
        %v1525 = vadd.f32 %v1461, 1.4214138
        %v1526 = vadd.f32 %v1462, 1.4214138
        %v1527 = vadd.f32 %v1463, 1.4214138
        %v1528 = vadd.f32 %v1464, 1.4214138
        %v1529 = vadd.f32 %v1465, 1.4214138
        %v1530 = vadd.f32 %v1466, 1.4214138
        %v1531 = vadd.f32 %v1467, 1.4214138
        %v1532 = vadd.f32 %v1468, 1.4214138
        %v1533 = vadd.f32 %v1469, 1.4214138
        %v1534 = vadd.f32 %v1470, 1.4214138
        %v1535 = vadd.f32 %v1471, 1.4214138
        %v1536 = vadd.f32 %v1472, 1.4214138
        %v1537 = vadd.f32 %v1473, 1.4214138
        %v1538 = vadd.f32 %v1474, 1.4214138
        %v1539 = vadd.f32 %v1475, 1.4214138
        %v1540 = vadd.f32 %v1476, 1.4214138
        %v1541 = vadd.f32 %v1477, 1.4214138
        %v1542 = vadd.f32 %v1478, 1.4214138
        %v1543 = vmul.f32 %v1479, %v1160
        %v1544 = vmul.f32 %v1480, %v1162
        %v1545 = vmul.f32 %v1481, %v1164
        %v1546 = vmul.f32 %v1482, %v1166
        %v1547 = vmul.f32 %v1483, %v1168
        %v1548 = vmul.f32 %v1484, %v1170
        %v1549 = vmul.f32 %v1485, %v1172
        %v1550 = vmul.f32 %v1486, %v1174
        %v1551 = vmul.f32 %v1487, %v1176
        %v1552 = vmul.f32 %v1488, %v1178
        %v1553 = vmul.f32 %v1489, %v1180
        %v1554 = vmul.f32 %v1490, %v1182
        %v1555 = vmul.f32 %v1491, %v1184
        %v1556 = vmul.f32 %v1492, %v1186
        %v1557 = vmul.f32 %v1493, %v1188
        %v1558 = vmul.f32 %v1494, %v1190
        %v1559 = vmul.f32 %v1495, %v1192
        %v1560 = vmul.f32 %v1496, %v1194
        %v1561 = vmul.f32 %v1497, %v1196
        %v1562 = vmul.f32 %v1498, %v1198
        %v1563 = vmul.f32 %v1499, %v1200
        %v1564 = vmul.f32 %v1500, %v1202
        %v1565 = vmul.f32 %v1501, %v1204
        %v1566 = vmul.f32 %v1502, %v1206
        %v1567 = vmul.f32 %v1503, %v1208
        %v1568 = vmul.f32 %v1504, %v1210
        %v1569 = vmul.f32 %v1505, %v1212
        %v1570 = vmul.f32 %v1506, %v1214
        %v1571 = vmul.f32 %v1507, %v1216
        %v1572 = vmul.f32 %v1508, %v1218
        %v1573 = vmul.f32 %v1509, %v1220
        %v1574 = vmul.f32 %v1510, %v1222
        %v1575 = vmul.f32 %v1511, %v1224
        %v1576 = vmul.f32 %v1512, %v1226
        %v1577 = vmul.f32 %v1513, %v1228
        %v1578 = vmul.f32 %v1514, %v1230
        %v1579 = vmul.f32 %v1515, %v1232
        %v1580 = vmul.f32 %v1516, %v1234
        %v1581 = vmul.f32 %v1517, %v1236
        %v1582 = vmul.f32 %v1518, %v1238
        %v1583 = vmul.f32 %v1519, %v1240
        %v1584 = vmul.f32 %v1520, %v1242
        %v1585 = vmul.f32 %v1521, %v1244
        %v1586 = vmul.f32 %v1522, %v1246
        %v1587 = vmul.f32 %v1523, %v1248
        %v1588 = vmul.f32 %v1524, %v1250
        %v1589 = vmul.f32 %v1525, %v1252
        %v1590 = vmul.f32 %v1526, %v1254
        %v1591 = vmul.f32 %v1527, %v1256
        %v1592 = vmul.f32 %v1528, %v1258
        %v1593 = vmul.f32 %v1529, %v1260
        %v1594 = vmul.f32 %v1530, %v1262
        %v1595 = vmul.f32 %v1531, %v1264
        %v1596 = vmul.f32 %v1532, %v1266
        %v1597 = vmul.f32 %v1533, %v1268
        %v1598 = vmul.f32 %v1534, %v1270
        %v1599 = vmul.f32 %v1535, %v1272
        %v1600 = vmul.f32 %v1536, %v1274
        %v1601 = vmul.f32 %v1537, %v1276
        %v1602 = vmul.f32 %v1538, %v1278
        %v1603 = vmul.f32 %v1539, %v1280
        %v1604 = vmul.f32 %v1540, %v1282
        %v1605 = vmul.f32 %v1541, %v1284
        %v1606 = vmul.f32 %v1542, %v1286
        %v1607 = vadd.f32 %v1543, -0.28449672
        %v1608 = vadd.f32 %v1544, -0.28449672
        %v1609 = vadd.f32 %v1545, -0.28449672
        %v1610 = vadd.f32 %v1546, -0.28449672
        %v1611 = vadd.f32 %v1547, -0.28449672
        %v1612 = vadd.f32 %v1548, -0.28449672
        %v1613 = vadd.f32 %v1549, -0.28449672
        %v1614 = vadd.f32 %v1550, -0.28449672
        %v1615 = vadd.f32 %v1551, -0.28449672
        %v1616 = vadd.f32 %v1552, -0.28449672
        %v1617 = vadd.f32 %v1553, -0.28449672
        %v1618 = vadd.f32 %v1554, -0.28449672
        %v1619 = vadd.f32 %v1555, -0.28449672
        %v1620 = vadd.f32 %v1556, -0.28449672
        %v1621 = vadd.f32 %v1557, -0.28449672
        %v1622 = vadd.f32 %v1558, -0.28449672
        %v1623 = vadd.f32 %v1559, -0.28449672
        %v1624 = vadd.f32 %v1560, -0.28449672
        %v1625 = vadd.f32 %v1561, -0.28449672
        %v1626 = vadd.f32 %v1562, -0.28449672
        %v1627 = vadd.f32 %v1563, -0.28449672
        %v1628 = vadd.f32 %v1564, -0.28449672
        %v1629 = vadd.f32 %v1565, -0.28449672
        %v1630 = vadd.f32 %v1566, -0.28449672
        %v1631 = vadd.f32 %v1567, -0.28449672
        %v1632 = vadd.f32 %v1568, -0.28449672
        %v1633 = vadd.f32 %v1569, -0.28449672
        %v1634 = vadd.f32 %v1570, -0.28449672
        %v1635 = vadd.f32 %v1571, -0.28449672
        %v1636 = vadd.f32 %v1572, -0.28449672
        %v1637 = vadd.f32 %v1573, -0.28449672
        %v1638 = vadd.f32 %v1574, -0.28449672
        %v1639 = vadd.f32 %v1575, -0.28449672
        %v1640 = vadd.f32 %v1576, -0.28449672
        %v1641 = vadd.f32 %v1577, -0.28449672
        %v1642 = vadd.f32 %v1578, -0.28449672
        %v1643 = vadd.f32 %v1579, -0.28449672
        %v1644 = vadd.f32 %v1580, -0.28449672
        %v1645 = vadd.f32 %v1581, -0.28449672
        %v1646 = vadd.f32 %v1582, -0.28449672
        %v1647 = vadd.f32 %v1583, -0.28449672
        %v1648 = vadd.f32 %v1584, -0.28449672
        %v1649 = vadd.f32 %v1585, -0.28449672
        %v1650 = vadd.f32 %v1586, -0.28449672
        %v1651 = vadd.f32 %v1587, -0.28449672
        %v1652 = vadd.f32 %v1588, -0.28449672
        %v1653 = vadd.f32 %v1589, -0.28449672
        %v1654 = vadd.f32 %v1590, -0.28449672
        %v1655 = vadd.f32 %v1591, -0.28449672
        %v1656 = vadd.f32 %v1592, -0.28449672
        %v1657 = vadd.f32 %v1593, -0.28449672
        %v1658 = vadd.f32 %v1594, -0.28449672
        %v1659 = vadd.f32 %v1595, -0.28449672
        %v1660 = vadd.f32 %v1596, -0.28449672
        %v1661 = vadd.f32 %v1597, -0.28449672
        %v1662 = vadd.f32 %v1598, -0.28449672
        %v1663 = vadd.f32 %v1599, -0.28449672
        %v1664 = vadd.f32 %v1600, -0.28449672
        %v1665 = vadd.f32 %v1601, -0.28449672
        %v1666 = vadd.f32 %v1602, -0.28449672
        %v1667 = vadd.f32 %v1603, -0.28449672
        %v1668 = vadd.f32 %v1604, -0.28449672
        %v1669 = vadd.f32 %v1605, -0.28449672
        %v1670 = vadd.f32 %v1606, -0.28449672
        %v1671 = vmul.f32 %v1607, %v1160
        %v1672 = vmul.f32 %v1608, %v1162
        %v1673 = vmul.f32 %v1609, %v1164
        %v1674 = vmul.f32 %v1610, %v1166
        %v1675 = vmul.f32 %v1611, %v1168
        %v1676 = vmul.f32 %v1612, %v1170
        %v1677 = vmul.f32 %v1613, %v1172
        %v1678 = vmul.f32 %v1614, %v1174
        %v1679 = vmul.f32 %v1615, %v1176
        %v1680 = vmul.f32 %v1616, %v1178
        %v1681 = vmul.f32 %v1617, %v1180
        %v1682 = vmul.f32 %v1618, %v1182
        %v1683 = vmul.f32 %v1619, %v1184
        %v1684 = vmul.f32 %v1620, %v1186
        %v1685 = vmul.f32 %v1621, %v1188
        %v1686 = vmul.f32 %v1622, %v1190
        %v1687 = vmul.f32 %v1623, %v1192
        %v1688 = vmul.f32 %v1624, %v1194
        %v1689 = vmul.f32 %v1625, %v1196
        %v1690 = vmul.f32 %v1626, %v1198
        %v1691 = vmul.f32 %v1627, %v1200
        %v1692 = vmul.f32 %v1628, %v1202
        %v1693 = vmul.f32 %v1629, %v1204
        %v1694 = vmul.f32 %v1630, %v1206
        %v1695 = vmul.f32 %v1631, %v1208
        %v1696 = vmul.f32 %v1632, %v1210
        %v1697 = vmul.f32 %v1633, %v1212
        %v1698 = vmul.f32 %v1634, %v1214
        %v1699 = vmul.f32 %v1635, %v1216
        %v1700 = vmul.f32 %v1636, %v1218
        %v1701 = vmul.f32 %v1637, %v1220
        %v1702 = vmul.f32 %v1638, %v1222
        %v1703 = vmul.f32 %v1639, %v1224
        %v1704 = vmul.f32 %v1640, %v1226
        %v1705 = vmul.f32 %v1641, %v1228
        %v1706 = vmul.f32 %v1642, %v1230
        %v1707 = vmul.f32 %v1643, %v1232
        %v1708 = vmul.f32 %v1644, %v1234
        %v1709 = vmul.f32 %v1645, %v1236
        %v1710 = vmul.f32 %v1646, %v1238
        %v1711 = vmul.f32 %v1647, %v1240
        %v1712 = vmul.f32 %v1648, %v1242
        %v1713 = vmul.f32 %v1649, %v1244
        %v1714 = vmul.f32 %v1650, %v1246
        %v1715 = vmul.f32 %v1651, %v1248
        %v1716 = vmul.f32 %v1652, %v1250
        %v1717 = vmul.f32 %v1653, %v1252
        %v1718 = vmul.f32 %v1654, %v1254
        %v1719 = vmul.f32 %v1655, %v1256
        %v1720 = vmul.f32 %v1656, %v1258
        %v1721 = vmul.f32 %v1657, %v1260
        %v1722 = vmul.f32 %v1658, %v1262
        %v1723 = vmul.f32 %v1659, %v1264
        %v1724 = vmul.f32 %v1660, %v1266
        %v1725 = vmul.f32 %v1661, %v1268
        %v1726 = vmul.f32 %v1662, %v1270
        %v1727 = vmul.f32 %v1663, %v1272
        %v1728 = vmul.f32 %v1664, %v1274
        %v1729 = vmul.f32 %v1665, %v1276
        %v1730 = vmul.f32 %v1666, %v1278
        %v1731 = vmul.f32 %v1667, %v1280
        %v1732 = vmul.f32 %v1668, %v1282
        %v1733 = vmul.f32 %v1669, %v1284
        %v1734 = vmul.f32 %v1670, %v1286
        %v1735 = vadd.f32 %v1671, 0.2548296
        %v1736 = vadd.f32 %v1672, 0.2548296
        %v1737 = vadd.f32 %v1673, 0.2548296
        %v1738 = vadd.f32 %v1674, 0.2548296
        %v1739 = vadd.f32 %v1675, 0.2548296
        %v1740 = vadd.f32 %v1676, 0.2548296
        %v1741 = vadd.f32 %v1677, 0.2548296
        %v1742 = vadd.f32 %v1678, 0.2548296
        %v1743 = vadd.f32 %v1679, 0.2548296
        %v1744 = vadd.f32 %v1680, 0.2548296
        %v1745 = vadd.f32 %v1681, 0.2548296
        %v1746 = vadd.f32 %v1682, 0.2548296
        %v1747 = vadd.f32 %v1683, 0.2548296
        %v1748 = vadd.f32 %v1684, 0.2548296
        %v1749 = vadd.f32 %v1685, 0.2548296
        %v1750 = vadd.f32 %v1686, 0.2548296
        %v1751 = vadd.f32 %v1687, 0.2548296
        %v1752 = vadd.f32 %v1688, 0.2548296
        %v1753 = vadd.f32 %v1689, 0.2548296
        %v1754 = vadd.f32 %v1690, 0.2548296
        %v1755 = vadd.f32 %v1691, 0.2548296
        %v1756 = vadd.f32 %v1692, 0.2548296
        %v1757 = vadd.f32 %v1693, 0.2548296
        %v1758 = vadd.f32 %v1694, 0.2548296
        %v1759 = vadd.f32 %v1695, 0.2548296
        %v1760 = vadd.f32 %v1696, 0.2548296
        %v1761 = vadd.f32 %v1697, 0.2548296
        %v1762 = vadd.f32 %v1698, 0.2548296
        %v1763 = vadd.f32 %v1699, 0.2548296
        %v1764 = vadd.f32 %v1700, 0.2548296
        %v1765 = vadd.f32 %v1701, 0.2548296
        %v1766 = vadd.f32 %v1702, 0.2548296
        %v1767 = vadd.f32 %v1703, 0.2548296
        %v1768 = vadd.f32 %v1704, 0.2548296
        %v1769 = vadd.f32 %v1705, 0.2548296
        %v1770 = vadd.f32 %v1706, 0.2548296
        %v1771 = vadd.f32 %v1707, 0.2548296
        %v1772 = vadd.f32 %v1708, 0.2548296
        %v1773 = vadd.f32 %v1709, 0.2548296
        %v1774 = vadd.f32 %v1710, 0.2548296
        %v1775 = vadd.f32 %v1711, 0.2548296
        %v1776 = vadd.f32 %v1712, 0.2548296
        %v1777 = vadd.f32 %v1713, 0.2548296
        %v1778 = vadd.f32 %v1714, 0.2548296
        %v1779 = vadd.f32 %v1715, 0.2548296
        %v1780 = vadd.f32 %v1716, 0.2548296
        %v1781 = vadd.f32 %v1717, 0.2548296
        %v1782 = vadd.f32 %v1718, 0.2548296
        %v1783 = vadd.f32 %v1719, 0.2548296
        %v1784 = vadd.f32 %v1720, 0.2548296
        %v1785 = vadd.f32 %v1721, 0.2548296
        %v1786 = vadd.f32 %v1722, 0.2548296
        %v1787 = vadd.f32 %v1723, 0.2548296
        %v1788 = vadd.f32 %v1724, 0.2548296
        %v1789 = vadd.f32 %v1725, 0.2548296
        %v1790 = vadd.f32 %v1726, 0.2548296
        %v1791 = vadd.f32 %v1727, 0.2548296
        %v1792 = vadd.f32 %v1728, 0.2548296
        %v1793 = vadd.f32 %v1729, 0.2548296
        %v1794 = vadd.f32 %v1730, 0.2548296
        %v1795 = vadd.f32 %v1731, 0.2548296
        %v1796 = vadd.f32 %v1732, 0.2548296
        %v1797 = vadd.f32 %v1733, 0.2548296
        %v1798 = vadd.f32 %v1734, 0.2548296
        %v1799 = vmul.f32 %v1735, %v1160
        %v1800 = vmul.f32 %v1736, %v1162
        %v1801 = vmul.f32 %v1737, %v1164
        %v1802 = vmul.f32 %v1738, %v1166
        %v1803 = vmul.f32 %v1739, %v1168
        %v1804 = vmul.f32 %v1740, %v1170
        %v1805 = vmul.f32 %v1741, %v1172
        %v1806 = vmul.f32 %v1742, %v1174
        %v1807 = vmul.f32 %v1743, %v1176
        %v1808 = vmul.f32 %v1744, %v1178
        %v1809 = vmul.f32 %v1745, %v1180
        %v1810 = vmul.f32 %v1746, %v1182
        %v1811 = vmul.f32 %v1747, %v1184
        %v1812 = vmul.f32 %v1748, %v1186
        %v1813 = vmul.f32 %v1749, %v1188
        %v1814 = vmul.f32 %v1750, %v1190
        %v1815 = vmul.f32 %v1751, %v1192
        %v1816 = vmul.f32 %v1752, %v1194
        %v1817 = vmul.f32 %v1753, %v1196
        %v1818 = vmul.f32 %v1754, %v1198
        %v1819 = vmul.f32 %v1755, %v1200
        %v1820 = vmul.f32 %v1756, %v1202
        %v1821 = vmul.f32 %v1757, %v1204
        %v1822 = vmul.f32 %v1758, %v1206
        %v1823 = vmul.f32 %v1759, %v1208
        %v1824 = vmul.f32 %v1760, %v1210
        %v1825 = vmul.f32 %v1761, %v1212
        %v1826 = vmul.f32 %v1762, %v1214
        %v1827 = vmul.f32 %v1763, %v1216
        %v1828 = vmul.f32 %v1764, %v1218
        %v1829 = vmul.f32 %v1765, %v1220
        %v1830 = vmul.f32 %v1766, %v1222
        %v1831 = vmul.f32 %v1767, %v1224
        %v1832 = vmul.f32 %v1768, %v1226
        %v1833 = vmul.f32 %v1769, %v1228
        %v1834 = vmul.f32 %v1770, %v1230
        %v1835 = vmul.f32 %v1771, %v1232
        %v1836 = vmul.f32 %v1772, %v1234
        %v1837 = vmul.f32 %v1773, %v1236
        %v1838 = vmul.f32 %v1774, %v1238
        %v1839 = vmul.f32 %v1775, %v1240
        %v1840 = vmul.f32 %v1776, %v1242
        %v1841 = vmul.f32 %v1777, %v1244
        %v1842 = vmul.f32 %v1778, %v1246
        %v1843 = vmul.f32 %v1779, %v1248
        %v1844 = vmul.f32 %v1780, %v1250
        %v1845 = vmul.f32 %v1781, %v1252
        %v1846 = vmul.f32 %v1782, %v1254
        %v1847 = vmul.f32 %v1783, %v1256
        %v1848 = vmul.f32 %v1784, %v1258
        %v1849 = vmul.f32 %v1785, %v1260
        %v1850 = vmul.f32 %v1786, %v1262
        %v1851 = vmul.f32 %v1787, %v1264
        %v1852 = vmul.f32 %v1788, %v1266
        %v1853 = vmul.f32 %v1789, %v1268
        %v1854 = vmul.f32 %v1790, %v1270
        %v1855 = vmul.f32 %v1791, %v1272
        %v1856 = vmul.f32 %v1792, %v1274
        %v1857 = vmul.f32 %v1793, %v1276
        %v1858 = vmul.f32 %v1794, %v1278
        %v1859 = vmul.f32 %v1795, %v1280
        %v1860 = vmul.f32 %v1796, %v1282
        %v1861 = vmul.f32 %v1797, %v1284
        %v1862 = vmul.f32 %v1798, %v1286
        %v1863 = vsub.f32 0.0, %v967
        %v1864 = vsub.f32 0.0, %v968
        %v1865 = vsub.f32 0.0, %v969
        %v1866 = vsub.f32 0.0, %v970
        %v1867 = vsub.f32 0.0, %v971
        %v1868 = vsub.f32 0.0, %v972
        %v1869 = vsub.f32 0.0, %v973
        %v1870 = vsub.f32 0.0, %v974
        %v1871 = vsub.f32 0.0, %v975
        %v1872 = vsub.f32 0.0, %v976
        %v1873 = vsub.f32 0.0, %v977
        %v1874 = vsub.f32 0.0, %v978
        %v1875 = vsub.f32 0.0, %v979
        %v1876 = vsub.f32 0.0, %v980
        %v1877 = vsub.f32 0.0, %v981
        %v1878 = vsub.f32 0.0, %v982
        %v1879 = vsub.f32 0.0, %v983
        %v1880 = vsub.f32 0.0, %v984
        %v1881 = vsub.f32 0.0, %v985
        %v1882 = vsub.f32 0.0, %v986
        %v1883 = vsub.f32 0.0, %v987
        %v1884 = vsub.f32 0.0, %v988
        %v1885 = vsub.f32 0.0, %v989
        %v1886 = vsub.f32 0.0, %v990
        %v1887 = vsub.f32 0.0, %v991
        %v1888 = vsub.f32 0.0, %v992
        %v1889 = vsub.f32 0.0, %v993
        %v1890 = vsub.f32 0.0, %v994
        %v1891 = vsub.f32 0.0, %v995
        %v1892 = vsub.f32 0.0, %v996
        %v1893 = vsub.f32 0.0, %v997
        %v1894 = vsub.f32 0.0, %v998
        %v1895 = vsub.f32 0.0, %v999
        %v1896 = vsub.f32 0.0, %v1000
        %v1897 = vsub.f32 0.0, %v1001
        %v1898 = vsub.f32 0.0, %v1002
        %v1899 = vsub.f32 0.0, %v1003
        %v1900 = vsub.f32 0.0, %v1004
        %v1901 = vsub.f32 0.0, %v1005
        %v1902 = vsub.f32 0.0, %v1006
        %v1903 = vsub.f32 0.0, %v1007
        %v1904 = vsub.f32 0.0, %v1008
        %v1905 = vsub.f32 0.0, %v1009
        %v1906 = vsub.f32 0.0, %v1010
        %v1907 = vsub.f32 0.0, %v1011
        %v1908 = vsub.f32 0.0, %v1012
        %v1909 = vsub.f32 0.0, %v1013
        %v1910 = vsub.f32 0.0, %v1014
        %v1911 = vsub.f32 0.0, %v1015
        %v1912 = vsub.f32 0.0, %v1016
        %v1913 = vsub.f32 0.0, %v1017
        %v1914 = vsub.f32 0.0, %v1018
        %v1915 = vsub.f32 0.0, %v1019
        %v1916 = vsub.f32 0.0, %v1020
        %v1917 = vsub.f32 0.0, %v1021
        %v1918 = vsub.f32 0.0, %v1022
        %v1919 = vsub.f32 0.0, %v1023
        %v1920 = vsub.f32 0.0, %v1024
        %v1921 = vsub.f32 0.0, %v1025
        %v1922 = vsub.f32 0.0, %v1026
        %v1923 = vsub.f32 0.0, %v1027
        %v1924 = vsub.f32 0.0, %v1028
        %v1925 = vsub.f32 0.0, %v1029
        %v1926 = vsub.f32 0.0, %v1030
        %v1927 = vmul.f32 %v1863, %v967
        %v1928 = vmul.f32 %v1864, %v968
        %v1929 = vmul.f32 %v1865, %v969
        %v1930 = vmul.f32 %v1866, %v970
        %v1931 = vmul.f32 %v1867, %v971
        %v1932 = vmul.f32 %v1868, %v972
        %v1933 = vmul.f32 %v1869, %v973
        %v1934 = vmul.f32 %v1870, %v974
        %v1935 = vmul.f32 %v1871, %v975
        %v1936 = vmul.f32 %v1872, %v976
        %v1937 = vmul.f32 %v1873, %v977
        %v1938 = vmul.f32 %v1874, %v978
        %v1939 = vmul.f32 %v1875, %v979
        %v1940 = vmul.f32 %v1876, %v980
        %v1941 = vmul.f32 %v1877, %v981
        %v1942 = vmul.f32 %v1878, %v982
        %v1943 = vmul.f32 %v1879, %v983
        %v1944 = vmul.f32 %v1880, %v984
        %v1945 = vmul.f32 %v1881, %v985
        %v1946 = vmul.f32 %v1882, %v986
        %v1947 = vmul.f32 %v1883, %v987
        %v1948 = vmul.f32 %v1884, %v988
        %v1949 = vmul.f32 %v1885, %v989
        %v1950 = vmul.f32 %v1886, %v990
        %v1951 = vmul.f32 %v1887, %v991
        %v1952 = vmul.f32 %v1888, %v992
        %v1953 = vmul.f32 %v1889, %v993
        %v1954 = vmul.f32 %v1890, %v994
        %v1955 = vmul.f32 %v1891, %v995
        %v1956 = vmul.f32 %v1892, %v996
        %v1957 = vmul.f32 %v1893, %v997
        %v1958 = vmul.f32 %v1894, %v998
        %v1959 = vmul.f32 %v1895, %v999
        %v1960 = vmul.f32 %v1896, %v1000
        %v1961 = vmul.f32 %v1897, %v1001
        %v1962 = vmul.f32 %v1898, %v1002
        %v1963 = vmul.f32 %v1899, %v1003
        %v1964 = vmul.f32 %v1900, %v1004
        %v1965 = vmul.f32 %v1901, %v1005
        %v1966 = vmul.f32 %v1902, %v1006
        %v1967 = vmul.f32 %v1903, %v1007
        %v1968 = vmul.f32 %v1904, %v1008
        %v1969 = vmul.f32 %v1905, %v1009
        %v1970 = vmul.f32 %v1906, %v1010
        %v1971 = vmul.f32 %v1907, %v1011
        %v1972 = vmul.f32 %v1908, %v1012
        %v1973 = vmul.f32 %v1909, %v1013
        %v1974 = vmul.f32 %v1910, %v1014
        %v1975 = vmul.f32 %v1911, %v1015
        %v1976 = vmul.f32 %v1912, %v1016
        %v1977 = vmul.f32 %v1913, %v1017
        %v1978 = vmul.f32 %v1914, %v1018
        %v1979 = vmul.f32 %v1915, %v1019
        %v1980 = vmul.f32 %v1916, %v1020
        %v1981 = vmul.f32 %v1917, %v1021
        %v1982 = vmul.f32 %v1918, %v1022
        %v1983 = vmul.f32 %v1919, %v1023
        %v1984 = vmul.f32 %v1920, %v1024
        %v1985 = vmul.f32 %v1921, %v1025
        %v1986 = vmul.f32 %v1922, %v1026
        %v1987 = vmul.f32 %v1923, %v1027
        %v1988 = vmul.f32 %v1924, %v1028
        %v1989 = vmul.f32 %v1925, %v1029
        %v1990 = vmul.f32 %v1926, %v1030
        %v1991 = vmul.f32 %v1927, 1.442695
        %v1992 = vpow.pop %v1991
        %v1993 = vmul.f32 %v1928, 1.442695
        %v1994 = vpow.pop %v1993
        %v1995 = vmul.f32 %v1929, 1.442695
        %v1996 = vpow.pop %v1995
        %v1997 = vmul.f32 %v1930, 1.442695
        %v1998 = vpow.pop %v1997
        %v1999 = vmul.f32 %v1931, 1.442695
        %v2000 = vpow.pop %v1999
        %v2001 = vmul.f32 %v1932, 1.442695
        %v2002 = vpow.pop %v2001
        %v2003 = vmul.f32 %v1933, 1.442695
        %v2004 = vpow.pop %v2003
        %v2005 = vmul.f32 %v1934, 1.442695
        %v2006 = vpow.pop %v2005
        %v2007 = vmul.f32 %v1935, 1.442695
        %v2008 = vpow.pop %v2007
        %v2009 = vmul.f32 %v1936, 1.442695
        %v2010 = vpow.pop %v2009
        %v2011 = vmul.f32 %v1937, 1.442695
        %v2012 = vpow.pop %v2011
        %v2013 = vmul.f32 %v1938, 1.442695
        %v2014 = vpow.pop %v2013
        %v2015 = vmul.f32 %v1939, 1.442695
        %v2016 = vpow.pop %v2015
        %v2017 = vmul.f32 %v1940, 1.442695
        %v2018 = vpow.pop %v2017
        %v2019 = vmul.f32 %v1941, 1.442695
        %v2020 = vpow.pop %v2019
        %v2021 = vmul.f32 %v1942, 1.442695
        %v2022 = vpow.pop %v2021
        %v2023 = vmul.f32 %v1943, 1.442695
        %v2024 = vpow.pop %v2023
        %v2025 = vmul.f32 %v1944, 1.442695
        %v2026 = vpow.pop %v2025
        %v2027 = vmul.f32 %v1945, 1.442695
        %v2028 = vpow.pop %v2027
        %v2029 = vmul.f32 %v1946, 1.442695
        %v2030 = vpow.pop %v2029
        %v2031 = vmul.f32 %v1947, 1.442695
        %v2032 = vpow.pop %v2031
        %v2033 = vmul.f32 %v1948, 1.442695
        %v2034 = vpow.pop %v2033
        %v2035 = vmul.f32 %v1949, 1.442695
        %v2036 = vpow.pop %v2035
        %v2037 = vmul.f32 %v1950, 1.442695
        %v2038 = vpow.pop %v2037
        %v2039 = vmul.f32 %v1951, 1.442695
        %v2040 = vpow.pop %v2039
        %v2041 = vmul.f32 %v1952, 1.442695
        %v2042 = vpow.pop %v2041
        %v2043 = vmul.f32 %v1953, 1.442695
        %v2044 = vpow.pop %v2043
        %v2045 = vmul.f32 %v1954, 1.442695
        %v2046 = vpow.pop %v2045
        %v2047 = vmul.f32 %v1955, 1.442695
        %v2048 = vpow.pop %v2047
        %v2049 = vmul.f32 %v1956, 1.442695
        %v2050 = vpow.pop %v2049
        %v2051 = vmul.f32 %v1957, 1.442695
        %v2052 = vpow.pop %v2051
        %v2053 = vmul.f32 %v1958, 1.442695
        %v2054 = vpow.pop %v2053
        %v2055 = vmul.f32 %v1959, 1.442695
        %v2056 = vpow.pop %v2055
        %v2057 = vmul.f32 %v1960, 1.442695
        %v2058 = vpow.pop %v2057
        %v2059 = vmul.f32 %v1961, 1.442695
        %v2060 = vpow.pop %v2059
        %v2061 = vmul.f32 %v1962, 1.442695
        %v2062 = vpow.pop %v2061
        %v2063 = vmul.f32 %v1963, 1.442695
        %v2064 = vpow.pop %v2063
        %v2065 = vmul.f32 %v1964, 1.442695
        %v2066 = vpow.pop %v2065
        %v2067 = vmul.f32 %v1965, 1.442695
        %v2068 = vpow.pop %v2067
        %v2069 = vmul.f32 %v1966, 1.442695
        %v2070 = vpow.pop %v2069
        %v2071 = vmul.f32 %v1967, 1.442695
        %v2072 = vpow.pop %v2071
        %v2073 = vmul.f32 %v1968, 1.442695
        %v2074 = vpow.pop %v2073
        %v2075 = vmul.f32 %v1969, 1.442695
        %v2076 = vpow.pop %v2075
        %v2077 = vmul.f32 %v1970, 1.442695
        %v2078 = vpow.pop %v2077
        %v2079 = vmul.f32 %v1971, 1.442695
        %v2080 = vpow.pop %v2079
        %v2081 = vmul.f32 %v1972, 1.442695
        %v2082 = vpow.pop %v2081
        %v2083 = vmul.f32 %v1973, 1.442695
        %v2084 = vpow.pop %v2083
        %v2085 = vmul.f32 %v1974, 1.442695
        %v2086 = vpow.pop %v2085
        %v2087 = vmul.f32 %v1975, 1.442695
        %v2088 = vpow.pop %v2087
        %v2089 = vmul.f32 %v1976, 1.442695
        %v2090 = vpow.pop %v2089
        %v2091 = vmul.f32 %v1977, 1.442695
        %v2092 = vpow.pop %v2091
        %v2093 = vmul.f32 %v1978, 1.442695
        %v2094 = vpow.pop %v2093
        %v2095 = vmul.f32 %v1979, 1.442695
        %v2096 = vpow.pop %v2095
        %v2097 = vmul.f32 %v1980, 1.442695
        %v2098 = vpow.pop %v2097
        %v2099 = vmul.f32 %v1981, 1.442695
        %v2100 = vpow.pop %v2099
        %v2101 = vmul.f32 %v1982, 1.442695
        %v2102 = vpow.pop %v2101
        %v2103 = vmul.f32 %v1983, 1.442695
        %v2104 = vpow.pop %v2103
        %v2105 = vmul.f32 %v1984, 1.442695
        %v2106 = vpow.pop %v2105
        %v2107 = vmul.f32 %v1985, 1.442695
        %v2108 = vpow.pop %v2107
        %v2109 = vmul.f32 %v1986, 1.442695
        %v2110 = vpow.pop %v2109
        %v2111 = vmul.f32 %v1987, 1.442695
        %v2112 = vpow.pop %v2111
        %v2113 = vmul.f32 %v1988, 1.442695
        %v2114 = vpow.pop %v2113
        %v2115 = vmul.f32 %v1989, 1.442695
        %v2116 = vpow.pop %v2115
        %v2117 = vmul.f32 %v1990, 1.442695
        %v2118 = vpow.pop %v2117
        %v2119 = vmul.f32 %v1799, %v1992
        %v2120 = vmul.f32 %v1800, %v1994
        %v2121 = vmul.f32 %v1801, %v1996
        %v2122 = vmul.f32 %v1802, %v1998
        %v2123 = vmul.f32 %v1803, %v2000
        %v2124 = vmul.f32 %v1804, %v2002
        %v2125 = vmul.f32 %v1805, %v2004
        %v2126 = vmul.f32 %v1806, %v2006
        %v2127 = vmul.f32 %v1807, %v2008
        %v2128 = vmul.f32 %v1808, %v2010
        %v2129 = vmul.f32 %v1809, %v2012
        %v2130 = vmul.f32 %v1810, %v2014
        %v2131 = vmul.f32 %v1811, %v2016
        %v2132 = vmul.f32 %v1812, %v2018
        %v2133 = vmul.f32 %v1813, %v2020
        %v2134 = vmul.f32 %v1814, %v2022
        %v2135 = vmul.f32 %v1815, %v2024
        %v2136 = vmul.f32 %v1816, %v2026
        %v2137 = vmul.f32 %v1817, %v2028
        %v2138 = vmul.f32 %v1818, %v2030
        %v2139 = vmul.f32 %v1819, %v2032
        %v2140 = vmul.f32 %v1820, %v2034
        %v2141 = vmul.f32 %v1821, %v2036
        %v2142 = vmul.f32 %v1822, %v2038
        %v2143 = vmul.f32 %v1823, %v2040
        %v2144 = vmul.f32 %v1824, %v2042
        %v2145 = vmul.f32 %v1825, %v2044
        %v2146 = vmul.f32 %v1826, %v2046
        %v2147 = vmul.f32 %v1827, %v2048
        %v2148 = vmul.f32 %v1828, %v2050
        %v2149 = vmul.f32 %v1829, %v2052
        %v2150 = vmul.f32 %v1830, %v2054
        %v2151 = vmul.f32 %v1831, %v2056
        %v2152 = vmul.f32 %v1832, %v2058
        %v2153 = vmul.f32 %v1833, %v2060
        %v2154 = vmul.f32 %v1834, %v2062
        %v2155 = vmul.f32 %v1835, %v2064
        %v2156 = vmul.f32 %v1836, %v2066
        %v2157 = vmul.f32 %v1837, %v2068
        %v2158 = vmul.f32 %v1838, %v2070
        %v2159 = vmul.f32 %v1839, %v2072
        %v2160 = vmul.f32 %v1840, %v2074
        %v2161 = vmul.f32 %v1841, %v2076
        %v2162 = vmul.f32 %v1842, %v2078
        %v2163 = vmul.f32 %v1843, %v2080
        %v2164 = vmul.f32 %v1844, %v2082
        %v2165 = vmul.f32 %v1845, %v2084
        %v2166 = vmul.f32 %v1846, %v2086
        %v2167 = vmul.f32 %v1847, %v2088
        %v2168 = vmul.f32 %v1848, %v2090
        %v2169 = vmul.f32 %v1849, %v2092
        %v2170 = vmul.f32 %v1850, %v2094
        %v2171 = vmul.f32 %v1851, %v2096
        %v2172 = vmul.f32 %v1852, %v2098
        %v2173 = vmul.f32 %v1853, %v2100
        %v2174 = vmul.f32 %v1854, %v2102
        %v2175 = vmul.f32 %v1855, %v2104
        %v2176 = vmul.f32 %v1856, %v2106
        %v2177 = vmul.f32 %v1857, %v2108
        %v2178 = vmul.f32 %v1858, %v2110
        %v2179 = vmul.f32 %v1859, %v2112
        %v2180 = vmul.f32 %v1860, %v2114
        %v2181 = vmul.f32 %v1861, %v2116
        %v2182 = vmul.f32 %v1862, %v2118
        %v2183 = vsub.f32 1.0, %v2119
        %v2184 = vsub.f32 1.0, %v2120
        %v2185 = vsub.f32 1.0, %v2121
        %v2186 = vsub.f32 1.0, %v2122
        %v2187 = vsub.f32 1.0, %v2123
        %v2188 = vsub.f32 1.0, %v2124
        %v2189 = vsub.f32 1.0, %v2125
        %v2190 = vsub.f32 1.0, %v2126
        %v2191 = vsub.f32 1.0, %v2127
        %v2192 = vsub.f32 1.0, %v2128
        %v2193 = vsub.f32 1.0, %v2129
        %v2194 = vsub.f32 1.0, %v2130
        %v2195 = vsub.f32 1.0, %v2131
        %v2196 = vsub.f32 1.0, %v2132
        %v2197 = vsub.f32 1.0, %v2133
        %v2198 = vsub.f32 1.0, %v2134
        %v2199 = vsub.f32 1.0, %v2135
        %v2200 = vsub.f32 1.0, %v2136
        %v2201 = vsub.f32 1.0, %v2137
        %v2202 = vsub.f32 1.0, %v2138
        %v2203 = vsub.f32 1.0, %v2139
        %v2204 = vsub.f32 1.0, %v2140
        %v2205 = vsub.f32 1.0, %v2141
        %v2206 = vsub.f32 1.0, %v2142
        %v2207 = vsub.f32 1.0, %v2143
        %v2208 = vsub.f32 1.0, %v2144
        %v2209 = vsub.f32 1.0, %v2145
        %v2210 = vsub.f32 1.0, %v2146
        %v2211 = vsub.f32 1.0, %v2147
        %v2212 = vsub.f32 1.0, %v2148
        %v2213 = vsub.f32 1.0, %v2149
        %v2214 = vsub.f32 1.0, %v2150
        %v2215 = vsub.f32 1.0, %v2151
        %v2216 = vsub.f32 1.0, %v2152
        %v2217 = vsub.f32 1.0, %v2153
        %v2218 = vsub.f32 1.0, %v2154
        %v2219 = vsub.f32 1.0, %v2155
        %v2220 = vsub.f32 1.0, %v2156
        %v2221 = vsub.f32 1.0, %v2157
        %v2222 = vsub.f32 1.0, %v2158
        %v2223 = vsub.f32 1.0, %v2159
        %v2224 = vsub.f32 1.0, %v2160
        %v2225 = vsub.f32 1.0, %v2161
        %v2226 = vsub.f32 1.0, %v2162
        %v2227 = vsub.f32 1.0, %v2163
        %v2228 = vsub.f32 1.0, %v2164
        %v2229 = vsub.f32 1.0, %v2165
        %v2230 = vsub.f32 1.0, %v2166
        %v2231 = vsub.f32 1.0, %v2167
        %v2232 = vsub.f32 1.0, %v2168
        %v2233 = vsub.f32 1.0, %v2169
        %v2234 = vsub.f32 1.0, %v2170
        %v2235 = vsub.f32 1.0, %v2171
        %v2236 = vsub.f32 1.0, %v2172
        %v2237 = vsub.f32 1.0, %v2173
        %v2238 = vsub.f32 1.0, %v2174
        %v2239 = vsub.f32 1.0, %v2175
        %v2240 = vsub.f32 1.0, %v2176
        %v2241 = vsub.f32 1.0, %v2177
        %v2242 = vsub.f32 1.0, %v2178
        %v2243 = vsub.f32 1.0, %v2179
        %v2244 = vsub.f32 1.0, %v2180
        %v2245 = vsub.f32 1.0, %v2181
        %v2246 = vsub.f32 1.0, %v2182
        %v2247 = vmul.f32 %v903, %v2183
        %v2248 = vmul.f32 %v904, %v2184
        %v2249 = vmul.f32 %v905, %v2185
        %v2250 = vmul.f32 %v906, %v2186
        %v2251 = vmul.f32 %v907, %v2187
        %v2252 = vmul.f32 %v908, %v2188
        %v2253 = vmul.f32 %v909, %v2189
        %v2254 = vmul.f32 %v910, %v2190
        %v2255 = vmul.f32 %v911, %v2191
        %v2256 = vmul.f32 %v912, %v2192
        %v2257 = vmul.f32 %v913, %v2193
        %v2258 = vmul.f32 %v914, %v2194
        %v2259 = vmul.f32 %v915, %v2195
        %v2260 = vmul.f32 %v916, %v2196
        %v2261 = vmul.f32 %v917, %v2197
        %v2262 = vmul.f32 %v918, %v2198
        %v2263 = vmul.f32 %v919, %v2199
        %v2264 = vmul.f32 %v920, %v2200
        %v2265 = vmul.f32 %v921, %v2201
        %v2266 = vmul.f32 %v922, %v2202
        %v2267 = vmul.f32 %v923, %v2203
        %v2268 = vmul.f32 %v924, %v2204
        %v2269 = vmul.f32 %v925, %v2205
        %v2270 = vmul.f32 %v926, %v2206
        %v2271 = vmul.f32 %v927, %v2207
        %v2272 = vmul.f32 %v928, %v2208
        %v2273 = vmul.f32 %v929, %v2209
        %v2274 = vmul.f32 %v930, %v2210
        %v2275 = vmul.f32 %v931, %v2211
        %v2276 = vmul.f32 %v932, %v2212
        %v2277 = vmul.f32 %v933, %v2213
        %v2278 = vmul.f32 %v934, %v2214
        %v2279 = vmul.f32 %v935, %v2215
        %v2280 = vmul.f32 %v936, %v2216
        %v2281 = vmul.f32 %v937, %v2217
        %v2282 = vmul.f32 %v938, %v2218
        %v2283 = vmul.f32 %v939, %v2219
        %v2284 = vmul.f32 %v940, %v2220
        %v2285 = vmul.f32 %v941, %v2221
        %v2286 = vmul.f32 %v942, %v2222
        %v2287 = vmul.f32 %v943, %v2223
        %v2288 = vmul.f32 %v944, %v2224
        %v2289 = vmul.f32 %v945, %v2225
        %v2290 = vmul.f32 %v946, %v2226
        %v2291 = vmul.f32 %v947, %v2227
        %v2292 = vmul.f32 %v948, %v2228
        %v2293 = vmul.f32 %v949, %v2229
        %v2294 = vmul.f32 %v950, %v2230
        %v2295 = vmul.f32 %v951, %v2231
        %v2296 = vmul.f32 %v952, %v2232
        %v2297 = vmul.f32 %v953, %v2233
        %v2298 = vmul.f32 %v954, %v2234
        %v2299 = vmul.f32 %v955, %v2235
        %v2300 = vmul.f32 %v956, %v2236
        %v2301 = vmul.f32 %v957, %v2237
        %v2302 = vmul.f32 %v958, %v2238
        %v2303 = vmul.f32 %v959, %v2239
        %v2304 = vmul.f32 %v960, %v2240
        %v2305 = vmul.f32 %v961, %v2241
        %v2306 = vmul.f32 %v962, %v2242
        %v2307 = vmul.f32 %v963, %v2243
        %v2308 = vmul.f32 %v964, %v2244
        %v2309 = vmul.f32 %v965, %v2245
        %v2310 = vmul.f32 %v966, %v2246
        %v2311 = vadd.f32 %v2247, 1.0
        %v2312 = vadd.f32 %v2248, 1.0
        %v2313 = vadd.f32 %v2249, 1.0
        %v2314 = vadd.f32 %v2250, 1.0
        %v2315 = vadd.f32 %v2251, 1.0
        %v2316 = vadd.f32 %v2252, 1.0
        %v2317 = vadd.f32 %v2253, 1.0
        %v2318 = vadd.f32 %v2254, 1.0
        %v2319 = vadd.f32 %v2255, 1.0
        %v2320 = vadd.f32 %v2256, 1.0
        %v2321 = vadd.f32 %v2257, 1.0
        %v2322 = vadd.f32 %v2258, 1.0
        %v2323 = vadd.f32 %v2259, 1.0
        %v2324 = vadd.f32 %v2260, 1.0
        %v2325 = vadd.f32 %v2261, 1.0
        %v2326 = vadd.f32 %v2262, 1.0
        %v2327 = vadd.f32 %v2263, 1.0
        %v2328 = vadd.f32 %v2264, 1.0
        %v2329 = vadd.f32 %v2265, 1.0
        %v2330 = vadd.f32 %v2266, 1.0
        %v2331 = vadd.f32 %v2267, 1.0
        %v2332 = vadd.f32 %v2268, 1.0
        %v2333 = vadd.f32 %v2269, 1.0
        %v2334 = vadd.f32 %v2270, 1.0
        %v2335 = vadd.f32 %v2271, 1.0
        %v2336 = vadd.f32 %v2272, 1.0
        %v2337 = vadd.f32 %v2273, 1.0
        %v2338 = vadd.f32 %v2274, 1.0
        %v2339 = vadd.f32 %v2275, 1.0
        %v2340 = vadd.f32 %v2276, 1.0
        %v2341 = vadd.f32 %v2277, 1.0
        %v2342 = vadd.f32 %v2278, 1.0
        %v2343 = vadd.f32 %v2279, 1.0
        %v2344 = vadd.f32 %v2280, 1.0
        %v2345 = vadd.f32 %v2281, 1.0
        %v2346 = vadd.f32 %v2282, 1.0
        %v2347 = vadd.f32 %v2283, 1.0
        %v2348 = vadd.f32 %v2284, 1.0
        %v2349 = vadd.f32 %v2285, 1.0
        %v2350 = vadd.f32 %v2286, 1.0
        %v2351 = vadd.f32 %v2287, 1.0
        %v2352 = vadd.f32 %v2288, 1.0
        %v2353 = vadd.f32 %v2289, 1.0
        %v2354 = vadd.f32 %v2290, 1.0
        %v2355 = vadd.f32 %v2291, 1.0
        %v2356 = vadd.f32 %v2292, 1.0
        %v2357 = vadd.f32 %v2293, 1.0
        %v2358 = vadd.f32 %v2294, 1.0
        %v2359 = vadd.f32 %v2295, 1.0
        %v2360 = vadd.f32 %v2296, 1.0
        %v2361 = vadd.f32 %v2297, 1.0
        %v2362 = vadd.f32 %v2298, 1.0
        %v2363 = vadd.f32 %v2299, 1.0
        %v2364 = vadd.f32 %v2300, 1.0
        %v2365 = vadd.f32 %v2301, 1.0
        %v2366 = vadd.f32 %v2302, 1.0
        %v2367 = vadd.f32 %v2303, 1.0
        %v2368 = vadd.f32 %v2304, 1.0
        %v2369 = vadd.f32 %v2305, 1.0
        %v2370 = vadd.f32 %v2306, 1.0
        %v2371 = vadd.f32 %v2307, 1.0
        %v2372 = vadd.f32 %v2308, 1.0
        %v2373 = vadd.f32 %v2309, 1.0
        %v2374 = vadd.f32 %v2310, 1.0
        %v2375 = vmul.f32 %v711, %v2311
        %v2376 = vmul.f32 %v712, %v2312
        %v2377 = vmul.f32 %v713, %v2313
        %v2378 = vmul.f32 %v714, %v2314
        %v2379 = vmul.f32 %v715, %v2315
        %v2380 = vmul.f32 %v716, %v2316
        %v2381 = vmul.f32 %v717, %v2317
        %v2382 = vmul.f32 %v718, %v2318
        %v2383 = vmul.f32 %v719, %v2319
        %v2384 = vmul.f32 %v720, %v2320
        %v2385 = vmul.f32 %v721, %v2321
        %v2386 = vmul.f32 %v722, %v2322
        %v2387 = vmul.f32 %v723, %v2323
        %v2388 = vmul.f32 %v724, %v2324
        %v2389 = vmul.f32 %v725, %v2325
        %v2390 = vmul.f32 %v726, %v2326
        %v2391 = vmul.f32 %v727, %v2327
        %v2392 = vmul.f32 %v728, %v2328
        %v2393 = vmul.f32 %v729, %v2329
        %v2394 = vmul.f32 %v730, %v2330
        %v2395 = vmul.f32 %v731, %v2331
        %v2396 = vmul.f32 %v732, %v2332
        %v2397 = vmul.f32 %v733, %v2333
        %v2398 = vmul.f32 %v734, %v2334
        %v2399 = vmul.f32 %v735, %v2335
        %v2400 = vmul.f32 %v736, %v2336
        %v2401 = vmul.f32 %v737, %v2337
        %v2402 = vmul.f32 %v738, %v2338
        %v2403 = vmul.f32 %v739, %v2339
        %v2404 = vmul.f32 %v740, %v2340
        %v2405 = vmul.f32 %v741, %v2341
        %v2406 = vmul.f32 %v742, %v2342
        %v2407 = vmul.f32 %v743, %v2343
        %v2408 = vmul.f32 %v744, %v2344
        %v2409 = vmul.f32 %v745, %v2345
        %v2410 = vmul.f32 %v746, %v2346
        %v2411 = vmul.f32 %v747, %v2347
        %v2412 = vmul.f32 %v748, %v2348
        %v2413 = vmul.f32 %v749, %v2349
        %v2414 = vmul.f32 %v750, %v2350
        %v2415 = vmul.f32 %v751, %v2351
        %v2416 = vmul.f32 %v752, %v2352
        %v2417 = vmul.f32 %v753, %v2353
        %v2418 = vmul.f32 %v754, %v2354
        %v2419 = vmul.f32 %v755, %v2355
        %v2420 = vmul.f32 %v756, %v2356
        %v2421 = vmul.f32 %v757, %v2357
        %v2422 = vmul.f32 %v758, %v2358
        %v2423 = vmul.f32 %v759, %v2359
        %v2424 = vmul.f32 %v760, %v2360
        %v2425 = vmul.f32 %v761, %v2361
        %v2426 = vmul.f32 %v762, %v2362
        %v2427 = vmul.f32 %v763, %v2363
        %v2428 = vmul.f32 %v764, %v2364
        %v2429 = vmul.f32 %v765, %v2365
        %v2430 = vmul.f32 %v766, %v2366
        %v2431 = vmul.f32 %v767, %v2367
        %v2432 = vmul.f32 %v768, %v2368
        %v2433 = vmul.f32 %v769, %v2369
        %v2434 = vmul.f32 %v770, %v2370
        %v2435 = vmul.f32 %v771, %v2371
        %v2436 = vmul.f32 %v772, %v2372
        %v2437 = vmul.f32 %v773, %v2373
        %v2438 = vmul.f32 %v774, %v2374
        %v2439 = vld [vmem:[#allocation8] sm:$0xff]
        %v2440 = vld [vmem:[#allocation8 + $0x8] sm:$0xff]
        %v2441 = vld [vmem:[#allocation8 + $0x10] sm:$0xff]
        %v2442 = vld [vmem:[#allocation8 + $0x18] sm:$0xff]
        %v2443 = vld [vmem:[#allocation8 + $0x20] sm:$0xff]
        %v2444 = vld [vmem:[#allocation8 + $0x28] sm:$0xff]
        %v2445 = vld [vmem:[#allocation8 + $0x30] sm:$0xff]
        %v2446 = vld [vmem:[#allocation8 + $0x38] sm:$0xff]
        %v2447 = vld [vmem:[#allocation8 + $0x40] sm:$0xff]
        %v2448 = vld [vmem:[#allocation8 + $0x48] sm:$0xff]
        %v2449 = vld [vmem:[#allocation8 + $0x50] sm:$0xff]
        %v2450 = vld [vmem:[#allocation8 + $0x58] sm:$0xff]
        %v2451 = vld [vmem:[#allocation8 + $0x60] sm:$0xff]
        %v2452 = vld [vmem:[#allocation8 + $0x68] sm:$0xff]
        %v2453 = vld [vmem:[#allocation8 + $0x70] sm:$0xff]
        %v2454 = vld [vmem:[#allocation8 + $0x78] sm:$0xff]
        %v2455 = vld [vmem:[#allocation8 + $0x80] sm:$0xff]
        %v2456 = vld [vmem:[#allocation8 + $0x88] sm:$0xff]
        %v2457 = vld [vmem:[#allocation8 + $0x90] sm:$0xff]
        %v2458 = vld [vmem:[#allocation8 + $0x98] sm:$0xff]
        %v2459 = vld [vmem:[#allocation8 + $0xa0] sm:$0xff]
        %v2460 = vld [vmem:[#allocation8 + $0xa8] sm:$0xff]
        %v2461 = vld [vmem:[#allocation8 + $0xb0] sm:$0xff]
        %v2462 = vld [vmem:[#allocation8 + $0xb8] sm:$0xff]
        %v2463 = vld [vmem:[#allocation8 + $0xc0] sm:$0xff]
        %v2464 = vld [vmem:[#allocation8 + $0xc8] sm:$0xff]
        %v2465 = vld [vmem:[#allocation8 + $0xd0] sm:$0xff]
        %v2466 = vld [vmem:[#allocation8 + $0xd8] sm:$0xff]
        %v2467 = vld [vmem:[#allocation8 + $0xe0] sm:$0xff]
        %v2468 = vld [vmem:[#allocation8 + $0xe8] sm:$0xff]
        %v2469 = vld [vmem:[#allocation8 + $0xf0] sm:$0xff]
        %v2470 = vld [vmem:[#allocation8 + $0xf8] sm:$0xff]
        %v2471 = vld [vmem:[#allocation8 + $0x100] sm:$0xff]
        %v2472 = vld [vmem:[#allocation8 + $0x108] sm:$0xff]
        %v2473 = vld [vmem:[#allocation8 + $0x110] sm:$0xff]
        %v2474 = vld [vmem:[#allocation8 + $0x118] sm:$0xff]
        %v2475 = vld [vmem:[#allocation8 + $0x120] sm:$0xff]
        %v2476 = vld [vmem:[#allocation8 + $0x128] sm:$0xff]
        %v2477 = vld [vmem:[#allocation8 + $0x130] sm:$0xff]
        %v2478 = vld [vmem:[#allocation8 + $0x138] sm:$0xff]
        %v2479 = vld [vmem:[#allocation8 + $0x140] sm:$0xff]
        %v2480 = vld [vmem:[#allocation8 + $0x148] sm:$0xff]
        %v2481 = vld [vmem:[#allocation8 + $0x150] sm:$0xff]
        %v2482 = vld [vmem:[#allocation8 + $0x158] sm:$0xff]
        %v2483 = vld [vmem:[#allocation8 + $0x160] sm:$0xff]
        %v2484 = vld [vmem:[#allocation8 + $0x168] sm:$0xff]
        %v2485 = vld [vmem:[#allocation8 + $0x170] sm:$0xff]
        %v2486 = vld [vmem:[#allocation8 + $0x178] sm:$0xff]
        %v2487 = vld [vmem:[#allocation8 + $0x180] sm:$0xff]
        %v2488 = vld [vmem:[#allocation8 + $0x188] sm:$0xff]
        %v2489 = vld [vmem:[#allocation8 + $0x190] sm:$0xff]
        %v2490 = vld [vmem:[#allocation8 + $0x198] sm:$0xff]
        %v2491 = vld [vmem:[#allocation8 + $0x1a0] sm:$0xff]
        %v2492 = vld [vmem:[#allocation8 + $0x1a8] sm:$0xff]
        %v2493 = vld [vmem:[#allocation8 + $0x1b0] sm:$0xff]
        %v2494 = vld [vmem:[#allocation8 + $0x1b8] sm:$0xff]
        %v2495 = vld [vmem:[#allocation8 + $0x1c0] sm:$0xff]
        %v2496 = vld [vmem:[#allocation8 + $0x1c8] sm:$0xff]
        %v2497 = vld [vmem:[#allocation8 + $0x1d0] sm:$0xff]
        %v2498 = vld [vmem:[#allocation8 + $0x1d8] sm:$0xff]
        %v2499 = vld [vmem:[#allocation8 + $0x1e0] sm:$0xff]
        %v2500 = vld [vmem:[#allocation8 + $0x1e8] sm:$0xff]
        %v2501 = vld [vmem:[#allocation8 + $0x1f0] sm:$0xff]
        %v2502 = vld [vmem:[#allocation8 + $0x1f8] sm:$0xff]
        %v2503 = vld [vmem:[%s4] sm:$0x1]
        %v2505 = vlaneseq
        %v2506 = vshrl.u32 %v2505, 7
        %v2507 = vsub.s32 0, %v2506
        %v2508 = vrot.slane %v2503, %v2507
        %2510 = vmatprep.subr.mxu0 0.0
        %2511 = vmatpush1.msra.mxu0 %v2454
        %2512 = vmatprep.subr.mxu0 0.0
        %2513 = vmatpush1.msra.mxu0 %v2453
        %2514 = vmatprep.subr.mxu0 0.0
        %2515 = vmatpush1.msra.mxu0 %v2452
        %2516 = vmatprep.subr.mxu0 0.0
        %2517 = vmatpush1.msra.mxu0 %v2451
        %2518 = vmatprep.subr.mxu0 0.0
        %2519 = vmatpush1.msra.mxu0 %v2450
        %2520 = vmatprep.subr.mxu0 0.0
        %2521 = vmatpush1.msra.mxu0 %v2449
        %2522 = vmatprep.subr.mxu0 0.0
        %2523 = vmatpush1.msra.mxu0 %v2448
        %2524 = vmatprep.subr.mxu0 0.0
        %2525 = vmatpush1.msra.mxu0 %v2447
        %2526 = vmatprep.subr.mxu0 0.0
        %2527 = vmatpush1.msra.mxu0 %v2446
        %2528 = vmatprep.subr.mxu0 0.0
        %2529 = vmatpush1.msra.mxu0 %v2445
        %2530 = vmatprep.subr.mxu0 0.0
        %2531 = vmatpush1.msra.mxu0 %v2444
        %2532 = vmatprep.subr.mxu0 0.0
        %2533 = vmatpush1.msra.mxu0 %v2443
        %2534 = vmatprep.subr.mxu0 0.0
        %2535 = vmatpush1.msra.mxu0 %v2442
        %2536 = vmatprep.subr.mxu0 0.0
        %2537 = vmatpush1.msra.mxu0 %v2441
        %2538 = vmatprep.subr.mxu0 0.0
        %2539 = vmatpush1.msra.mxu0 %v2440
        %2540 = vmatprep.subr.mxu0 0.0
        %2541 = vmatpush1.msra.mxu0 %v2439
        %2542 = vmatprep.subr.mxu0 0.0
        %2543 = vmatpush2.msra.mxu0 %v2470
        %2544 = vmatprep.subr.mxu0 0.0
        %2545 = vmatpush2.msra.mxu0 %v2469
        %2546 = vmatprep.subr.mxu0 0.0
        %2547 = vmatpush2.msra.mxu0 %v2468
        %2548 = vmatprep.subr.mxu0 0.0
        %2549 = vmatpush2.msra.mxu0 %v2467
        %2550 = vmatprep.subr.mxu0 0.0
        %2551 = vmatpush2.msra.mxu0 %v2466
        %2552 = vmatprep.subr.mxu0 0.0
        %2553 = vmatpush2.msra.mxu0 %v2465
        %2554 = vmatprep.subr.mxu0 0.0
        %2555 = vmatpush2.msra.mxu0 %v2464
        %2556 = vmatprep.subr.mxu0 0.0
        %2557 = vmatpush2.msra.mxu0 %v2463
        %2558 = vmatprep.subr.mxu0 0.0
        %2559 = vmatpush2.msra.mxu0 %v2462
        %2560 = vmatprep.subr.mxu0 0.0
        %2561 = vmatpush2.msra.mxu0 %v2461
        %2562 = vmatprep.subr.mxu0 0.0
        %2563 = vmatpush2.msra.mxu0 %v2460
        %2564 = vmatprep.subr.mxu0 0.0
        %2565 = vmatpush2.msra.mxu0 %v2459
        %2566 = vmatprep.subr.mxu0 0.0
        %2567 = vmatpush2.msra.mxu0 %v2458
        %2568 = vmatprep.subr.mxu0 0.0
        %2569 = vmatpush2.msra.mxu0 %v2457
        %2570 = vmatprep.subr.mxu0 0.0
        %2571 = vmatpush2.msra.mxu0 %v2456
        %2572 = vmatprep.subr.mxu0 0.0
        %2573 = vmatpush2.msra.mxu0 %v2455
        %2574 = vmatprep.mubr.f32.mxu0 %v2376
        %2575 = vmatmul.mubr.f32.gmra.mxu0 %v2375
        %v2576 = vpop.f32.mrf.mxu0
        %v2577 = vadd.f32 %v2508, %v2576
        %v2578 = vpop.f32.mrf.mxu0
        %2579 = vmatprep.mubr.f32.mxu0 %v2380
        %2580 = vmatmul.mubr.f32.gmra.mxu0 %v2379
        %v2581 = vpop.f32.mrf.mxu0
        %v2582 = vadd.f32 %v2508, %v2581
        %v2583 = vpop.f32.mrf.mxu0
        %2584 = vmatprep.mubr.f32.mxu0 %v2384
        %2585 = vmatmul.mubr.f32.gmra.mxu0 %v2383
        %v2586 = vpop.f32.mrf.mxu0
        %v2587 = vadd.f32 %v2508, %v2586
        %v2588 = vpop.f32.mrf.mxu0
        %2589 = vmatprep.mubr.f32.mxu0 %v2388
        %2590 = vmatmul.mubr.f32.gmra.mxu0 %v2387
        %v2591 = vpop.f32.mrf.mxu0
        %v2592 = vadd.f32 %v2508, %v2591
        %v2593 = vpop.f32.mrf.mxu0
        %2594 = vmatprep.mubr.f32.mxu0 %v2392
        %2595 = vmatmul.mubr.f32.gmra.mxu0 %v2391
        %v2596 = vpop.f32.mrf.mxu0
        %v2597 = vadd.f32 %v2508, %v2596
        %v2598 = vpop.f32.mrf.mxu0
        %2599 = vmatprep.mubr.f32.mxu0 %v2396
        %2600 = vmatmul.mubr.f32.gmra.mxu0 %v2395
        %v2601 = vpop.f32.mrf.mxu0
        %v2602 = vadd.f32 %v2508, %v2601
        %v2603 = vpop.f32.mrf.mxu0
        %2604 = vmatprep.mubr.f32.mxu0 %v2400
        %2605 = vmatmul.mubr.f32.gmra.mxu0 %v2399
        %v2606 = vpop.f32.mrf.mxu0
        %v2607 = vadd.f32 %v2508, %v2606
        %v2608 = vpop.f32.mrf.mxu0
        %2609 = vmatprep.mubr.f32.mxu0 %v2404
        %2610 = vmatmul.mubr.f32.gmra.mxu0 %v2403
        %v2611 = vpop.f32.mrf.mxu0
        %v2612 = vadd.f32 %v2508, %v2611
        %v2613 = vpop.f32.mrf.mxu0
        %2614 = vmatprep.mubr.f32.mxu0 %v2408
        %2615 = vmatmul.mubr.f32.gmra.mxu0 %v2407
        %v2616 = vpop.f32.mrf.mxu0
        %v2617 = vadd.f32 %v2508, %v2616
        %v2618 = vpop.f32.mrf.mxu0
        %2619 = vmatprep.mubr.f32.mxu0 %v2412
        %2620 = vmatmul.mubr.f32.gmra.mxu0 %v2411
        %v2621 = vpop.f32.mrf.mxu0
        %v2622 = vadd.f32 %v2508, %v2621
        %v2623 = vpop.f32.mrf.mxu0
        %2624 = vmatprep.mubr.f32.mxu0 %v2416
        %2625 = vmatmul.mubr.f32.gmra.mxu0 %v2415
        %v2626 = vpop.f32.mrf.mxu0
        %v2627 = vadd.f32 %v2508, %v2626
        %v2628 = vpop.f32.mrf.mxu0
        %2629 = vmatprep.mubr.f32.mxu0 %v2420
        %2630 = vmatmul.mubr.f32.gmra.mxu0 %v2419
        %v2631 = vpop.f32.mrf.mxu0
        %v2632 = vadd.f32 %v2508, %v2631
        %v2633 = vpop.f32.mrf.mxu0
        %2634 = vmatprep.mubr.f32.mxu0 %v2424
        %2635 = vmatmul.mubr.f32.gmra.mxu0 %v2423
        %v2636 = vpop.f32.mrf.mxu0
        %v2637 = vadd.f32 %v2508, %v2636
        %v2638 = vpop.f32.mrf.mxu0
        %2639 = vmatprep.mubr.f32.mxu0 %v2428
        %2640 = vmatmul.mubr.f32.gmra.mxu0 %v2427
        %v2641 = vpop.f32.mrf.mxu0
        %v2642 = vadd.f32 %v2508, %v2641
        %v2643 = vpop.f32.mrf.mxu0
        %2644 = vmatprep.mubr.f32.mxu0 %v2432
        %2645 = vmatmul.mubr.f32.gmra.mxu0 %v2431
        %v2646 = vpop.f32.mrf.mxu0
        %v2647 = vadd.f32 %v2508, %v2646
        %v2648 = vpop.f32.mrf.mxu0
        %2649 = vmatprep.mubr.f32.mxu0 %v2436
        %2650 = vmatmul.mubr.f32.gmra.mxu0 %v2435
        %v2651 = vpop.f32.mrf.mxu0
        %v2652 = vadd.f32 %v2508, %v2651
        %v2653 = vpop.f32.mrf.mxu0
        %2654 = vdwg.mxu0
        %2655 = vmatprep.subr.mxu0 0.0
        %2656 = vmatpush1.msra.mxu0 %v2486
        %2657 = vmatprep.subr.mxu0 0.0
        %2658 = vmatpush1.msra.mxu0 %v2485
        %2659 = vmatprep.subr.mxu0 0.0
        %2660 = vmatpush1.msra.mxu0 %v2484
        %2661 = vmatprep.subr.mxu0 0.0
        %2662 = vmatpush1.msra.mxu0 %v2483
        %2663 = vmatprep.subr.mxu0 0.0
        %2664 = vmatpush1.msra.mxu0 %v2482
        %2665 = vmatprep.subr.mxu0 0.0
        %2666 = vmatpush1.msra.mxu0 %v2481
        %2667 = vmatprep.subr.mxu0 0.0
        %2668 = vmatpush1.msra.mxu0 %v2480
        %2669 = vmatprep.subr.mxu0 0.0
        %2670 = vmatpush1.msra.mxu0 %v2479
        %2671 = vmatprep.subr.mxu0 0.0
        %2672 = vmatpush1.msra.mxu0 %v2478
        %2673 = vmatprep.subr.mxu0 0.0
        %2674 = vmatpush1.msra.mxu0 %v2477
        %2675 = vmatprep.subr.mxu0 0.0
        %2676 = vmatpush1.msra.mxu0 %v2476
        %2677 = vmatprep.subr.mxu0 0.0
        %2678 = vmatpush1.msra.mxu0 %v2475
        %2679 = vmatprep.subr.mxu0 0.0
        %2680 = vmatpush1.msra.mxu0 %v2474
        %2681 = vmatprep.subr.mxu0 0.0
        %2682 = vmatpush1.msra.mxu0 %v2473
        %2683 = vmatprep.subr.mxu0 0.0
        %2684 = vmatpush1.msra.mxu0 %v2472
        %2685 = vmatprep.subr.mxu0 0.0
        %2686 = vmatpush1.msra.mxu0 %v2471
        %2687 = vmatprep.subr.mxu0 0.0
        %2688 = vmatpush2.msra.mxu0 %v2502
        %2689 = vmatprep.subr.mxu0 0.0
        %2690 = vmatpush2.msra.mxu0 %v2501
        %2691 = vmatprep.subr.mxu0 0.0
        %2692 = vmatpush2.msra.mxu0 %v2500
        %2693 = vmatprep.subr.mxu0 0.0
        %2694 = vmatpush2.msra.mxu0 %v2499
        %2695 = vmatprep.subr.mxu0 0.0
        %2696 = vmatpush2.msra.mxu0 %v2498
        %2697 = vmatprep.subr.mxu0 0.0
        %2698 = vmatpush2.msra.mxu0 %v2497
        %2699 = vmatprep.subr.mxu0 0.0
        %2700 = vmatpush2.msra.mxu0 %v2496
        %2701 = vmatprep.subr.mxu0 0.0
        %2702 = vmatpush2.msra.mxu0 %v2495
        %2703 = vmatprep.subr.mxu0 0.0
        %2704 = vmatpush2.msra.mxu0 %v2494
        %2705 = vmatprep.subr.mxu0 0.0
        %2706 = vmatpush2.msra.mxu0 %v2493
        %2707 = vmatprep.subr.mxu0 0.0
        %2708 = vmatpush2.msra.mxu0 %v2492
        %2709 = vmatprep.subr.mxu0 0.0
        %2710 = vmatpush2.msra.mxu0 %v2491
        %2711 = vmatprep.subr.mxu0 0.0
        %2712 = vmatpush2.msra.mxu0 %v2490
        %2713 = vmatprep.subr.mxu0 0.0
        %2714 = vmatpush2.msra.mxu0 %v2489
        %2715 = vmatprep.subr.mxu0 0.0
        %2716 = vmatpush2.msra.mxu0 %v2488
        %2717 = vmatprep.subr.mxu0 0.0
        %2718 = vmatpush2.msra.mxu0 %v2487
        %2719 = vmatprep.mubr.f32.mxu0 %v2378
        %2720 = vmatmul.mubr.f32.gmra.mxu0 %v2377
        %v2721 = vpop.f32.mrf.mxu0
        %v2722 = vadd.f32 %v2577, %v2721
        %v2723 = vpop.f32.mrf.mxu0
        %2724 = vmatprep.mubr.f32.mxu0 %v2382
        %2725 = vmatmul.mubr.f32.gmra.mxu0 %v2381
        %v2726 = vpop.f32.mrf.mxu0
        %v2727 = vadd.f32 %v2582, %v2726
        %v2728 = vpop.f32.mrf.mxu0
        %2729 = vmatprep.mubr.f32.mxu0 %v2386
        %2730 = vmatmul.mubr.f32.gmra.mxu0 %v2385
        %v2731 = vpop.f32.mrf.mxu0
        %v2732 = vadd.f32 %v2587, %v2731
        %v2733 = vpop.f32.mrf.mxu0
        %2734 = vmatprep.mubr.f32.mxu0 %v2390
        %2735 = vmatmul.mubr.f32.gmra.mxu0 %v2389
        %v2736 = vpop.f32.mrf.mxu0
        %v2737 = vadd.f32 %v2592, %v2736
        %v2738 = vpop.f32.mrf.mxu0
        %2739 = vmatprep.mubr.f32.mxu0 %v2394
        %2740 = vmatmul.mubr.f32.gmra.mxu0 %v2393
        %v2741 = vpop.f32.mrf.mxu0
        %v2742 = vadd.f32 %v2597, %v2741
        %v2743 = vpop.f32.mrf.mxu0
        %2744 = vmatprep.mubr.f32.mxu0 %v2398
        %2745 = vmatmul.mubr.f32.gmra.mxu0 %v2397
        %v2746 = vpop.f32.mrf.mxu0
        %v2747 = vadd.f32 %v2602, %v2746
        %v2748 = vpop.f32.mrf.mxu0
        %2749 = vmatprep.mubr.f32.mxu0 %v2402
        %2750 = vmatmul.mubr.f32.gmra.mxu0 %v2401
        %v2751 = vpop.f32.mrf.mxu0
        %v2752 = vadd.f32 %v2607, %v2751
        %v2753 = vpop.f32.mrf.mxu0
        %2754 = vmatprep.mubr.f32.mxu0 %v2406
        %2755 = vmatmul.mubr.f32.gmra.mxu0 %v2405
        %v2756 = vpop.f32.mrf.mxu0
        %v2757 = vadd.f32 %v2612, %v2756
        %v2758 = vpop.f32.mrf.mxu0
        %2759 = vmatprep.mubr.f32.mxu0 %v2410
        %2760 = vmatmul.mubr.f32.gmra.mxu0 %v2409
        %v2761 = vpop.f32.mrf.mxu0
        %v2762 = vadd.f32 %v2617, %v2761
        %v2763 = vpop.f32.mrf.mxu0
        %2764 = vmatprep.mubr.f32.mxu0 %v2414
        %2765 = vmatmul.mubr.f32.gmra.mxu0 %v2413
        %v2766 = vpop.f32.mrf.mxu0
        %v2767 = vadd.f32 %v2622, %v2766
        %v2768 = vpop.f32.mrf.mxu0
        %2769 = vmatprep.mubr.f32.mxu0 %v2418
        %2770 = vmatmul.mubr.f32.gmra.mxu0 %v2417
        %v2771 = vpop.f32.mrf.mxu0
        %v2772 = vadd.f32 %v2627, %v2771
        %v2773 = vpop.f32.mrf.mxu0
        %2774 = vmatprep.mubr.f32.mxu0 %v2422
        %2775 = vmatmul.mubr.f32.gmra.mxu0 %v2421
        %v2776 = vpop.f32.mrf.mxu0
        %v2777 = vadd.f32 %v2632, %v2776
        %v2778 = vpop.f32.mrf.mxu0
        %2779 = vmatprep.mubr.f32.mxu0 %v2426
        %2780 = vmatmul.mubr.f32.gmra.mxu0 %v2425
        %v2781 = vpop.f32.mrf.mxu0
        %v2782 = vadd.f32 %v2637, %v2781
        %v2783 = vpop.f32.mrf.mxu0
        %2784 = vmatprep.mubr.f32.mxu0 %v2430
        %2785 = vmatmul.mubr.f32.gmra.mxu0 %v2429
        %v2786 = vpop.f32.mrf.mxu0
        %v2787 = vadd.f32 %v2642, %v2786
        %v2788 = vpop.f32.mrf.mxu0
        %2789 = vmatprep.mubr.f32.mxu0 %v2434
        %2790 = vmatmul.mubr.f32.gmra.mxu0 %v2433
        %v2791 = vpop.f32.mrf.mxu0
        %v2792 = vadd.f32 %v2647, %v2791
        %v2793 = vpop.f32.mrf.mxu0
        %2794 = vmatprep.mubr.f32.mxu0 %v2438
        %2795 = vmatmul.mubr.f32.gmra.mxu0 %v2437
        %v2796 = vpop.f32.mrf.mxu0
        %v2797 = vadd.f32 %v2652, %v2796
        %v2798 = vpop.f32.mrf.mxu0
        %2799 = vdwg.mxu0
        %2800 = vst [vmem:[%s284] sm:$0xff] %v2722
        %2801 = vst [vmem:[%s284 + $0x8] sm:$0xff] %v2727
        %2802 = vst [vmem:[%s284 + $0x10] sm:$0xff] %v2732
        %2803 = vst [vmem:[%s284 + $0x18] sm:$0xff] %v2737
        %2804 = vst [vmem:[%s284 + $0x20] sm:$0xff] %v2742
        %2805 = vst [vmem:[%s284 + $0x28] sm:$0xff] %v2747
        %2806 = vst [vmem:[%s284 + $0x30] sm:$0xff] %v2752
        %2807 = vst [vmem:[%s284 + $0x38] sm:$0xff] %v2757
        %2808 = vst [vmem:[%s284 + $0x40] sm:$0xff] %v2762
        %2809 = vst [vmem:[%s284 + $0x48] sm:$0xff] %v2767
        %2810 = vst [vmem:[%s284 + $0x50] sm:$0xff] %v2772
        %2811 = vst [vmem:[%s284 + $0x58] sm:$0xff] %v2777
        %2812 = vst [vmem:[%s284 + $0x60] sm:$0xff] %v2782
        %2813 = vst [vmem:[%s284 + $0x68] sm:$0xff] %v2787
        %2814 = vst [vmem:[%s284 + $0x70] sm:$0xff] %v2792
        %2815 = vst [vmem:[%s284 + $0x78] sm:$0xff] %v2797
        %s2816 = sand.u32 %s142, 1
        %s2817 = scalar_lea.sflag [#allocation4], %s2816
        %s2818 = sand.u32 %s142, 1
        %s2819 = smul.addr %s2818, 128
        %s2820 = scalar_lea.vmem [#allocation10], %s2819
        // Predicated region
        $region57: #{tpu_custom_call.1} parent=39 // pred_check
          %p2821 = pneg %p152
        $region58: #{tpu_custom_call.1} parent=39 // pred_check_branch
          %2823 = sbr.rel (%p2821) target = $region60
        $region59: #{tpu_custom_call.1} parent=39 // pred_region
          %s2824 = smul.u32 16, %s24
          %s2826 = ssub.s32 2048, 2048
          %2827 = vsyncadd %s2817, %s2826
          %s2828 = smul.addr %s2824, 128
          %s2829 = scalar_lea.hbm %s5, %s2828
          %s2830 = sshll.u32 %s2820, 4
          %s2831 = int_to_ptr.vmem [resolvable:$true] %s2830
          %2836 = dma.vmem_to_hbm [thread:$0]  %s2831, 2048, %s2829, %s2817, 128, 128, 8
        $region60: #{tpu_custom_call.1} parent=39 // pred_fallthru
          _
      $region40: #{tpu_custom_call.1} parent=5 // pred_fallthru
        _
      %p2837 = scmp.le.s32.totalorder 2, %s19
      // Predicated region
      $region61: #{tpu_custom_call.1} parent=5 // pred_check
        %p2838 = pneg %p2837
      $region62: #{tpu_custom_call.1} parent=5 // pred_check_branch
        %2840 = sbr.rel (%p2838) target = $region64
      $region63: #{tpu_custom_call.1} parent=5 // pred_region
        %s2841 = ssub.s32 %s19, 2
        // Predicated region
        $region65: #{tpu_custom_call.1} parent=63 // pred_check
          %p2842 = pneg %p158
        $region66: #{tpu_custom_call.1} parent=63 // pred_check_branch
          %2844 = sbr.rel (%p2842) target = $region68
        $region67: #{tpu_custom_call.1} parent=63 // pred_region
          %s2845 = sand.u32 %s143, 1
          %s2846 = scalar_lea.sflag [#allocation4], %s2845
          %s2847 = sand.u32 %s143, 1
          %s2848 = smul.addr %s2847, 128
          %s2849 = scalar_lea.vmem [#allocation10], %s2848
          %2850 = dma.done %s2846, 2048
        $region68: #{tpu_custom_call.1} parent=63 // pred_fallthru
          _
      $region64: #{tpu_custom_call.1} parent=5 // pred_fallthru
        _
    $region6: #{tpu_custom_call.1} parent=1 // loop_footer
      %s23 = sadd.s32 1, %s19
    $region7: #{tpu_custom_call.1} parent=1 // loop_footer_branch
      %18 = sbr.rel target = $region3
    $region8: #{tpu_custom_call.1} parent=1 // loop_exit
      _
    %2851 = vsyncpa [#allocation3], 1
    %s2852 = scalar_lea.sflag [#allocation3], 1
    %2853 = vsyncpa %s2852, 1
    %2854 = vsyncpa [#allocation6], 1
    %2855 = vsyncpa [#allocation9], 1
    %2856 = vsyncpa [#allocation4], 1
    %s2857 = scalar_lea.sflag [#allocation4], 1
    %2858 = vsyncpa %s2857, 1

</llo_original>
